<compile_context>
chip_gen: v6e
topology: v6e:2x2x1
jax: 0.10.0
libtpu: 0.0.40
codegen_flags: <defaults>
</compile_context>

<pallas_src>
import math

import jax
import jax.numpy as jnp
from jax.experimental import pallas as pl
from jax.experimental.pallas import tpu as pltpu

LANE = 128
SUBLANE = 8


def round_up(x, m):
    return ((x + m - 1) // m) * m


def pad_to(a, shape):
    pads = [(0, t - s) for s, t in zip(a.shape, shape)]
    return jnp.pad(a, pads)


# ---------------------------------------------------------------------------
# Kernel 1: fused MyNNConv + TopKPooling score, one graph per grid step.
# ---------------------------------------------------------------------------
def make_conv_pool_call(B, N, Fin, Fout, k):
    kdim = (k + 1) * Fin

    def kernel(x_ref, h_ref, adj_ref, w_ref, bconv_ref, poolw_ref,
               xout_ref, score_ref):
        x = x_ref[0]          # (N, Fin)  bf16
        h = h_ref[0]          # (N, k)    bf16  = relu(w1)[roi]
        adj = adj_ref[0]      # (N, N)    f32, 0 == no edge

        # Per-node transform as a single long-K MXU matmul:
        #   x'_n = x_n @ (B2 + sum_c h[n,c] W2[c])
        #        = [x_n | h[n,0]x_n | ... | h[n,k-1]x_n] @ [B2; W2[0]; ...; W2[k-1]]
        pieces = [x] + [h[:, c:c + 1] * x for c in range(k)]
        xh = jnp.concatenate(pieces, axis=1)                       # (N, (k+1)Fin) bf16
        xt = jnp.dot(xh, w_ref[...],
                     preferred_element_type=jnp.float32)           # (N, Fout) f32

        # Edge-softmax over incoming edges (row i = target node), f32.
        edge = adj != 0.0
        logits = jnp.where(edge, adj, jnp.float32(-1e30))
        m = jnp.max(logits, axis=-1, keepdims=True)
        e = jnp.where(edge, jnp.exp(logits - m), 0.0)
        denom = jnp.maximum(jnp.sum(e, axis=-1, keepdims=True), 1e-12)
        alpha = e / denom

        out = jnp.dot(alpha.astype(jnp.bfloat16), xt.astype(jnp.bfloat16),
                      preferred_element_type=jnp.float32) + bconv_ref[...]
        xout_ref[0] = out.astype(jnp.bfloat16)

        # TopKPooling score sigmoid((out . w)/||w||) as a lane-dense (1, N) row.
        w = poolw_ref[...]                                         # (1, Fout) f32
        inv_norm = jax.lax.rsqrt(jnp.maximum(jnp.sum(w * w), 1e-12))
        s = jax.lax.dot_general(w, out, (((1,), (1,)), ((), ())),
                                preferred_element_type=jnp.float32) * inv_norm
        score_ref[0] = jax.nn.sigmoid(s)                           # (1, N)

    return pl.pallas_call(
        kernel,
        grid=(B,),
        in_specs=[
            pl.BlockSpec((1, N, Fin), lambda b: (b, 0, 0)),
            pl.BlockSpec((1, N, k), lambda b: (b, 0, 0)),
            pl.BlockSpec((1, N, N), lambda b: (b, 0, 0)),
            # Constant index_map: weights stay VMEM-resident across the B grid.
            pl.BlockSpec((kdim, Fout), lambda b: (0, 0)),
            pl.BlockSpec((1, Fout), lambda b: (0, 0)),
            pl.BlockSpec((1, Fout), lambda b: (0, 0)),
        ],
        out_specs=[
            pl.BlockSpec((1, N, Fout), lambda b: (b, 0, 0)),
            pl.BlockSpec((1, 1, N), lambda b: (b, 0, 0)),
        ],
        out_shape=[
            jax.ShapeDtypeStruct((B, N, Fout), jnp.bfloat16),
            jax.ShapeDtypeStruct((B, 1, N), jnp.float32),
        ],
        # TODO(synk): on v7x with B == 1 (or odd B), add a second "parallel" grid
        # axis over Fout column blocks so the second TensorCore also gets work.
        compiler_params=pltpu.CompilerParams(dimension_semantics=("parallel",)),
    )


# ---------------------------------------------------------------------------
# Kernel 2: classifier head; BatchNorm (eval) folded into fc1/fc2 host-side.
# ---------------------------------------------------------------------------
def make_mlp_call(B, Din, D2, D3, C):
    def kernel(x_ref, w1, b1, w2, b2, w3, b3, o_ref):
        x = x_ref[...].astype(jnp.bfloat16)
        h = jnp.maximum(
            jnp.dot(x, w1[...], preferred_element_type=jnp.float32) + b1[...], 0.0)
        # F.dropout(p=0.25, training=False) -> identity (eval mode)
        h = jnp.maximum(
            jnp.dot(h.astype(jnp.bfloat16), w2[...],
                    preferred_element_type=jnp.float32) + b2[...], 0.0)
        o_ref[...] = jnp.dot(h.astype(jnp.bfloat16), w3[...],
                             preferred_element_type=jnp.float32) + b3[...]

    full = lambda shape: pl.BlockSpec(shape, lambda i: (0,) * len(shape))
    return pl.pallas_call(
        kernel,
        grid=(1,),
        in_specs=[
            full((B, Din)),
            full((Din, D2)), full((1, D2)),
            full((D2, D3)), full((1, D3)),
            full((D3, C)), full((1, C)),
        ],
        out_specs=full((B, C)),
        out_shape=jax.ShapeDtypeStruct((B, C), jnp.float32),
        compiler_params=pltpu.CompilerParams(dimension_semantics=("arbitrary",)),
    )


# ---------------------------------------------------------------------------
# Host-side (plain XLA) glue: weight merge, hidden gather, top-k, readout, BN.
# ---------------------------------------------------------------------------
def merge_conv_weight(w2, b2, k, fin, fout, fin_p, fout_p):
    """Stack [B2; W2[0]; ...; W2[k-1]] -> ((k+1)*fin_p, fout_p) bf16, zero padded."""
    stack = jnp.concatenate([b2.reshape(1, fin, fout), w2.reshape(k, fin, fout)],
                            axis=0)
    stack = jnp.pad(stack, ((0, 0), (0, fin_p - fin), (0, fout_p - fout)))
    return stack.reshape((k + 1) * fin_p, fout_p).astype(jnp.bfloat16)


def node_hidden(w1, roi_ids):
    """h_n = ReLU(Linear(R, k, bias=False)(one_hot(roi_n))) == relu(w1)[roi_n]."""
    return jnp.take(jnp.maximum(w1, 0.0), roi_ids, axis=0)        # (B, N, k)


def topk_pool(xout, adj, roi, score, node_valid, ratio, n_true):
    """TopKPooling (multiplier=1, sigmoid scores); padded/extra rows are masked."""
    B, Np, Fp = xout.shape
    keep = int(math.ceil(ratio * n_true))
    keep_pad = min(round_up(keep, SUBLANE), Np)

    masked = jnp.where(node_valid[None, :], score, -1.0)          # pads lose to any sigmoid
    vals, perm = jax.lax.top_k(masked, keep_pad)                  # (B, keep_pad)
    sel_valid = jnp.arange(keep_pad) < keep                       # (keep_pad,)

    xg = jnp.take_along_axis(xout, perm[:, :, None], axis=1).astype(jnp.float32)
    xg = xg * vals[:, :, None]                                    # x[perm] * score[perm]
    xg = jnp.where(sel_valid[None, :, None], xg, 0.0)

    adjg = jnp.take_along_axis(adj, perm[:, :, None], axis=1)
    adjg = jnp.take_along_axis(adjg, perm[:, None, :], axis=2)
    m = sel_valid.astype(adj.dtype)
    adjg = adjg * m[None, :, None] * m[None, None, :]             # drop extra rows/cols

    roig = jnp.where(sel_valid[None, :],
                     jnp.take_along_axis(roi, perm, axis=1), 0)
    return xg, adjg, roig, sel_valid, keep


def readout(x_pooled, sel_valid, keep, f_true):
    """cat([global_max_pool, global_mean_pool]) over the valid pooled nodes."""
    neg = jnp.finfo(x_pooled.dtype).min
    xmax = jnp.max(jnp.where(sel_valid[None, :, None], x_pooled, neg), axis=1)
    xmean = jnp.sum(x_pooled, axis=1) / jnp.float32(keep)         # invalid rows are 0
    return jnp.concatenate([xmax[:, :f_true], xmean[:, :f_true]], axis=1)


def fold_bn(w, b, scale, shift):
    """Fold eval-mode BatchNorm (y = x*scale + shift) into the preceding Linear."""
    return w * scale, b * scale + shift


def gnn_forward(params, x, adj, roi_ids, *, ratio, k):
    B, N, Fin = x.shape
    dim1 = params["c1_bias"].shape[-1]
    dim2 = params["c2_bias"].shape[-1]

    # Lane-align node/feature dims; padded nodes have no edges and are masked.
    Np = round_up(N, LANE)
    Fip = round_up(Fin, LANE)
    F1p = round_up(dim1, LANE)
    F2p = round_up(dim2, LANE)

    x_p = pad_to(x, (B, Np, Fip)).astype(jnp.bfloat16)
    adj_p = pad_to(adj, (B, Np, Np))                              # f32
    roi_p = pad_to(roi_ids, (B, Np))
    node_valid = jnp.arange(Np) < N

    w1m = merge_conv_weight(params["c1_w2"], params["c1_b2"], k, Fin, dim1, Fip, F1p)
    w2m = merge_conv_weight(params["c2_w2"], params["c2_b2"], k, dim1, dim2, F1p, F2p)
    bconv1 = pad_to(params["c1_bias"], (1, F1p))
    bconv2 = pad_to(params["c2_bias"], (1, F2p))
    p1w = pad_to(params["p1_w"], (1, F1p))
    p2w = pad_to(params["p2_w"], (1, F2p))

    # ----- conv1 + pool1 score (fused Pallas kernel) -----
    h1 = node_hidden(params["c1_w1"], roi_p).astype(jnp.bfloat16)  # (B, Np, k)
    xo1, s1 = make_conv_pool_call(B, Np, Fip, F1p, k)(
        x_p, h1, adj_p, w1m, bconv1, p1w)
    xp1, adj1, roi1, sel1, keep1 = topk_pool(xo1, adj_p, roi_p, s1[:, 0, :],
                                             node_valid, ratio, N)
    x1 = readout(xp1, sel1, keep1, dim1)                           # (B, 2*dim1)

    # ----- conv2 + pool2 score -----
    N1p = xp1.shape[1]
    h2 = node_hidden(params["c2_w1"], roi1).astype(jnp.bfloat16)   # (B, N1p, k)
    xo2, s2 = make_conv_pool_call(B, N1p, F1p, F2p, k)(
        xp1.astype(jnp.bfloat16), h2, adj1, w2m, bconv2, p2w)
    xp2, _adj2, _roi2, sel2, keep2 = topk_pool(xo2, adj1, roi1, s2[:, 0, :],
                                               sel1, ratio, keep1)
    x2 = readout(xp2, sel2, keep2, dim2)                           # (B, 2*dim2)

    feat = jnp.concatenate([x1, x2], axis=1)                       # (B, (dim1+dim2)*2)

    fc1_w, fc1_b = fold_bn(params["fc1_w"], params["fc1_b"],
                           params["bn1_scale"], params["bn1_shift"])
    fc2_w, fc2_b = fold_bn(params["fc2_w"], params["fc2_b"],
                           params["bn2_scale"], params["bn2_shift"])

    D2, D3, C = fc1_w.shape[1], fc2_w.shape[1], params["fc3_w"].shape[1]
    logits = make_mlp_call(B, feat.shape[1], D2, D3, C)(
        feat,
        fc1_w.astype(jnp.bfloat16), fc1_b,
        fc2_w.astype(jnp.bfloat16), fc2_b,
        params["fc3_w"].astype(jnp.bfloat16), params["fc3_b"])

    # TODO(synk): original forward also returns score0/score1/score2/score_extra,
    # which are undefined in the provided source; returning logits + pool weights.
    return logits, params["p1_w"], params["p2_w"]


# ---------------------------------------------------------------------------
# Deterministic parameter init + example inputs.
# ---------------------------------------------------------------------------
def init_params(key, *, R, indim, dim1, dim2, dim3, nclass, k):
    ks = jax.random.split(key, 16)
    n = lambda kk, shape, s=0.1: (s * jax.random.normal(kk, shape)).astype(jnp.float32)
    eps = 1e-5
    bn_scale = lambda d: jnp.full((1, d), 1.0 / jnp.sqrt(1.0 + eps), jnp.float32)
    bn_shift = lambda d: jnp.zeros((1, d), jnp.float32)
    return {
        # conv1 nn: Linear(R,k,bias=False) -> ReLU -> Linear(k, dim1*indim)
        "c1_w1": n(ks[0], (R, k)), "c1_w2": n(ks[1], (k, indim * dim1)),
        "c1_b2": n(ks[2], (1, indim * dim1)), "c1_bias": n(ks[3], (1, dim1)),
        "p1_w": n(ks[4], (1, dim1)),
        # conv2
        "c2_w1": n(ks[5], (R, k)), "c2_w2": n(ks[6], (k, dim1 * dim2)),
        "c2_b2": n(ks[7], (1, dim1 * dim2)), "c2_bias": n(ks[8], (1, dim2)),
        "p2_w": n(ks[9], (1, dim2)),
        # head
        "fc1_w": n(ks[10], ((dim1 + dim2) * 2, dim2)), "fc1_b": n(ks[11], (1, dim2)),
        "bn1_scale": bn_scale(dim2), "bn1_shift": bn_shift(dim2),
        "fc2_w": n(ks[12], (dim2, dim3)), "fc2_b": n(ks[13], (1, dim3)),
        "bn2_scale": bn_scale(dim3), "bn2_shift": bn_shift(dim3),
        "fc3_w": n(ks[14], (dim3, nclass)), "fc3_b": n(ks[15], (1, nclass)),
    }


if __name__ == "__main__":
    # Small synthetic configuration (module defaults dim1=dim2=332, R=332, dim3=128
    # scaled down for a quick test; structure is identical).
    B, N = 2, 16            # graphs, nodes(ROIs) per graph
    R = N                   # one ROI id per node
    indim, dim1, dim2, dim3 = 4, 8, 8, 16
    nclass, k, ratio = 2, 6, 0.5

    root = jax.random.PRNGKey(0)
    kp, kx, km, ka = jax.random.split(root, 4)

    params = init_params(kp, R=R, indim=indim, dim1=dim1, dim2=dim2,
                         dim3=dim3, nclass=nclass, k=k)

    x = jax.random.normal(kx, (B, N, indim), jnp.float32)
    roi_ids = jnp.tile(jnp.arange(N, dtype=jnp.int32)[None], (B, 1))   # node -> ROI id
    mask = jax.random.bernoulli(km, 0.6, (B, N, N)).astype(jnp.float32)
    # edge weight 0 means "no edge"; keep real edge weights bounded away from 0
    adj = (0.1 + 0.9 * jax.random.uniform(ka, (B, N, N), jnp.float32)) * mask

    logits, p1w, p2w = gnn_forward(params, x, adj, roi_ids, ratio=ratio, k=k)
    jax.block_until_ready((logits, p1w, p2w))
    assert logits.shape == (B, nclass)
    print("KERNEL_OK")
</pallas_src>

<mosaic_0001>
module attributes {stable_mosaic.version = 11 : i64} {
  func.func @kernel(%arg0: i32, %arg1: memref<1x128x128xbf16, #tpu.memory_space<vmem>>, %arg2: memref<1x128x6xbf16, #tpu.memory_space<vmem>>, %arg3: memref<1x128x128xf32, #tpu.memory_space<vmem>>, %arg4: memref<896x128xbf16, #tpu.memory_space<vmem>>, %arg5: memref<1x128xf32, #tpu.memory_space<vmem>>, %arg6: memref<1x128xf32, #tpu.memory_space<vmem>>, %arg7: memref<1x128x128xbf16, #tpu.memory_space<vmem>>, %arg8: memref<1x1x128xf32, #tpu.memory_space<vmem>>) attributes {dimension_semantics = [#tpu.dimension_semantics<parallel>], iteration_bounds = array<i64: 2>, scalar_prefetch = 0 : i64, scratch_operands = 0 : i64, tpu.core_type = #tpu.core_type<tc>, window_params = [{transform_indices = @transform_0, window_bounds = array<i64: 1, 128, 128>}, {transform_indices = @transform_1, window_bounds = array<i64: 1, 128, 6>}, {transform_indices = @transform_2, window_bounds = array<i64: 1, 128, 128>}, {pipeline_mode = #tpu.pipeline_mode<synchronous>, transform_indices = @transform_3, window_bounds = array<i64: 896, 128>}, {pipeline_mode = #tpu.pipeline_mode<synchronous>, transform_indices = @transform_4, window_bounds = array<i64: 1, 128>}, {pipeline_mode = #tpu.pipeline_mode<synchronous>, transform_indices = @transform_5, window_bounds = array<i64: 1, 128>}, {transform_indices = @transform_6, window_bounds = array<i64: 1, 128, 128>}, {transform_indices = @transform_7, window_bounds = array<i64: 1, 1, 128>}]} {
    %c0 = arith.constant 0 : index
    %c0_0 = arith.constant 0 : index
    %c0_1 = arith.constant 0 : index
    %0 = vector.load %arg1[%c0, %c0_0, %c0_1] : memref<1x128x128xbf16, #tpu.memory_space<vmem>>, vector<1x128x128xbf16>
    %1 = vector.shape_cast %0 : vector<1x128x128xbf16> to vector<128x128xbf16>
    %c0_2 = arith.constant 0 : index
    %c0_3 = arith.constant 0 : index
    %c0_4 = arith.constant 0 : index
    %2 = vector.load %arg2[%c0_2, %c0_3, %c0_4] : memref<1x128x6xbf16, #tpu.memory_space<vmem>>, vector<1x128x6xbf16>
    %3 = vector.shape_cast %2 : vector<1x128x6xbf16> to vector<128x6xbf16>
    %c0_5 = arith.constant 0 : index
    %c0_6 = arith.constant 0 : index
    %c0_7 = arith.constant 0 : index
    %4 = vector.load %arg3[%c0_5, %c0_6, %c0_7] : memref<1x128x128xf32, #tpu.memory_space<vmem>>, vector<1x128x128xf32>
    %5 = vector.shape_cast %4 : vector<1x128x128xf32> to vector<128x128xf32>
    %6 = vector.extract_strided_slice %3 {offsets = [0, 0], sizes = [128, 1], strides = [1, 1]} : vector<128x6xbf16> to vector<128x1xbf16>
    %7 = vector.broadcast %6 : vector<128x1xbf16> to vector<128x128xbf16>
    %8 = arith.mulf %7, %1 : vector<128x128xbf16>
    %9 = vector.extract_strided_slice %3 {offsets = [0, 1], sizes = [128, 1], strides = [1, 1]} : vector<128x6xbf16> to vector<128x1xbf16>
    %10 = vector.broadcast %9 : vector<128x1xbf16> to vector<128x128xbf16>
    %11 = arith.mulf %10, %1 : vector<128x128xbf16>
    %12 = vector.extract_strided_slice %3 {offsets = [0, 2], sizes = [128, 1], strides = [1, 1]} : vector<128x6xbf16> to vector<128x1xbf16>
    %13 = vector.broadcast %12 : vector<128x1xbf16> to vector<128x128xbf16>
    %14 = arith.mulf %13, %1 : vector<128x128xbf16>
    %15 = vector.extract_strided_slice %3 {offsets = [0, 3], sizes = [128, 1], strides = [1, 1]} : vector<128x6xbf16> to vector<128x1xbf16>
    %16 = vector.broadcast %15 : vector<128x1xbf16> to vector<128x128xbf16>
    %17 = arith.mulf %16, %1 : vector<128x128xbf16>
    %18 = vector.extract_strided_slice %3 {offsets = [0, 4], sizes = [128, 1], strides = [1, 1]} : vector<128x6xbf16> to vector<128x1xbf16>
    %19 = vector.broadcast %18 : vector<128x1xbf16> to vector<128x128xbf16>
    %20 = arith.mulf %19, %1 : vector<128x128xbf16>
    %21 = vector.extract_strided_slice %3 {offsets = [0, 5], sizes = [128, 1], strides = [1, 1]} : vector<128x6xbf16> to vector<128x1xbf16>
    %22 = vector.broadcast %21 : vector<128x1xbf16> to vector<128x128xbf16>
    %23 = arith.mulf %22, %1 : vector<128x128xbf16>
    %24 = tpu.concatenate %1, %8, %11, %14, %17, %20, %23 in 1 : vector<128x128xbf16>, vector<128x128xbf16>, vector<128x128xbf16>, vector<128x128xbf16>, vector<128x128xbf16>, vector<128x128xbf16>, vector<128x128xbf16> -> vector<128x896xbf16>
    %c0_8 = arith.constant 0 : index
    %c0_9 = arith.constant 0 : index
    %25 = vector.load %arg4[%c0_8, %c0_9] : memref<896x128xbf16, #tpu.memory_space<vmem>>, vector<896x128xbf16>
    %cst = arith.constant dense<0.000000e+00> : vector<128x128xf32>
    %26 = tpu.matmul %24, %25, %cst {dimension_numbers = #tpu.dot_dimension_numbers<[1], [0], [0], [1], [0, 0, 1, 1], [], []>} : vector<128x896xbf16>, vector<896x128xbf16>, vector<128x128xf32> -> vector<128x128xf32>
    %cst_10 = arith.constant 0.000000e+00 : f32
    %27 = vector.broadcast %cst_10 : f32 to vector<128x128xf32>
    %28 = arith.cmpf one, %5, %27 : vector<128x128xf32>
    %cst_11 = arith.constant -1.000000e+30 : f32
    %29 = vector.broadcast %cst_11 : f32 to vector<128x128xf32>
    %30 = arith.select %28, %5, %29 : vector<128x128xi1>, vector<128x128xf32>
    %cst_12 = arith.constant dense<0xFF800000> : vector<128xf32>
    %31 = vector.multi_reduction <maximumf>, %30, %cst_12 [1] : vector<128x128xf32> to vector<128xf32>
    %32 = vector.shape_cast %31 : vector<128xf32> to vector<128x1xf32>
    %33 = vector.broadcast %32 : vector<128x1xf32> to vector<128x128xf32>
    %34 = arith.subf %30, %33 : vector<128x128xf32>
    %35 = math.exp %34 : vector<128x128xf32>
    %cst_13 = arith.constant 0.000000e+00 : f32
    %36 = vector.broadcast %cst_13 : f32 to vector<128x128xf32>
    %37 = arith.select %28, %35, %36 : vector<128x128xi1>, vector<128x128xf32>
    %cst_14 = arith.constant dense<0.000000e+00> : vector<128xf32>
    %38 = vector.multi_reduction <add>, %37, %cst_14 [1] : vector<128x128xf32> to vector<128xf32>
    %39 = vector.shape_cast %38 : vector<128xf32> to vector<128x1xf32>
    %cst_15 = arith.constant 9.99999996E-13 : f32
    %40 = vector.broadcast %cst_15 : f32 to vector<128x1xf32>
    %41 = arith.maximumf %39, %40 : vector<128x1xf32>
    %42 = vector.broadcast %41 : vector<128x1xf32> to vector<128x128xf32>
    %43 = arith.divf %37, %42 : vector<128x128xf32>
    %44 = arith.truncf %43 : vector<128x128xf32> to vector<128x128xbf16>
    %45 = arith.truncf %26 : vector<128x128xf32> to vector<128x128xbf16>
    %cst_16 = arith.constant dense<0.000000e+00> : vector<128x128xf32>
    %46 = tpu.matmul %44, %45, %cst_16 {dimension_numbers = #tpu.dot_dimension_numbers<[1], [0], [0], [1], [0, 0, 1, 1], [], []>} : vector<128x128xbf16>, vector<128x128xbf16>, vector<128x128xf32> -> vector<128x128xf32>
    %c0_17 = arith.constant 0 : index
    %c0_18 = arith.constant 0 : index
    %47 = vector.load %arg5[%c0_17, %c0_18] : memref<1x128xf32, #tpu.memory_space<vmem>>, vector<1x128xf32>
    %48 = vector.broadcast %47 : vector<1x128xf32> to vector<128x128xf32>
    %49 = arith.addf %46, %48 : vector<128x128xf32>
    %50 = arith.truncf %49 : vector<128x128xf32> to vector<128x128xbf16>
    %c0_19 = arith.constant 0 : index
    %c0_20 = arith.constant 0 : index
    %c0_21 = arith.constant 0 : index
    %51 = vector.load %arg7[%c0_19, %c0_20, %c0_21] : memref<1x128x128xbf16, #tpu.memory_space<vmem>>, vector<1x128x128xbf16>
    %52 = vector.shape_cast %51 : vector<1x128x128xbf16> to vector<128x128xbf16>
    %53 = vector.shape_cast %50 : vector<128x128xbf16> to vector<1x128x128xbf16>
    tpu.vector_store %arg7[%c0_19, %c0_20, %c0_21], %53 {strides = array<i32>} : memref<1x128x128xbf16, #tpu.memory_space<vmem>>, vector<1x128x128xbf16>,
    %c0_22 = arith.constant 0 : index
    %c0_23 = arith.constant 0 : index
    %54 = vector.load %arg6[%c0_22, %c0_23] : memref<1x128xf32, #tpu.memory_space<vmem>>, vector<1x128xf32>
    %55 = arith.mulf %54, %54 : vector<1x128xf32>
    %56 = vector.shape_cast %55 : vector<1x128xf32> to vector<1x1x128xf32>
    %cst_24 = arith.constant dense<0.000000e+00> : vector<1xf32>
    %57 = vector.multi_reduction <add>, %56, %cst_24 [1, 2] : vector<1x1x128xf32> to vector<1xf32>
    %58 = vector.shape_cast %57 : vector<1xf32> to vector<1x1x1xf32>
    %59 = vector.extract %58[0, 0, 0] : f32 from vector<1x1x1xf32>
    %cst_25 = arith.constant 9.99999996E-13 : f32
    %60 = arith.maximumf %59, %cst_25 : f32
    %61 = math.rsqrt %60 : f32
    %cst_26 = arith.constant dense<0.000000e+00> : vector<1x128xf32>
    %62 = tpu.matmul %54, %49, %cst_26 {dimension_numbers = #tpu.dot_dimension_numbers<[1], [1], [0], [0], [0, 0, 1, 0], [], []>} : vector<1x128xf32>, vector<128x128xf32>, vector<1x128xf32> -> vector<1x128xf32>
    %63 = vector.broadcast %61 : f32 to vector<1x128xf32>
    %64 = arith.mulf %62, %63 : vector<1x128xf32>
    %65 = arith.negf %64 : vector<1x128xf32>
    %66 = math.exp %65 : vector<1x128xf32>
    %cst_27 = arith.constant 1.000000e+00 : f32
    %67 = vector.broadcast %cst_27 : f32 to vector<1x128xf32>
    %68 = arith.addf %67, %66 : vector<1x128xf32>
    %69 = arith.divf %67, %68 : vector<1x128xf32>
    %c0_28 = arith.constant 0 : index
    %c0_29 = arith.constant 0 : index
    %c0_30 = arith.constant 0 : index
    %70 = vector.load %arg8[%c0_28, %c0_29, %c0_30] : memref<1x1x128xf32, #tpu.memory_space<vmem>>, vector<1x1x128xf32>
    %71 = vector.shape_cast %70 : vector<1x1x128xf32> to vector<1x128xf32>
    %72 = vector.shape_cast %69 : vector<1x128xf32> to vector<1x1x128xf32>
    tpu.vector_store %arg8[%c0_28, %c0_29, %c0_30], %72 {strides = array<i32>} : memref<1x1x128xf32, #tpu.memory_space<vmem>>, vector<1x1x128xf32>,
    return
  }
  func.func @transform_0(%arg0: i32) -> (i32, i32, i32) {
    %c0_i32 = arith.constant 0 : i32
    %c0_i32_0 = arith.constant 0 : i32
    %c0_i32_1 = arith.constant 0 : i32
    return %arg0, %c0_i32, %c0_i32_0 : i32, i32, i32
  }
  func.func @transform_1(%arg0: i32) -> (i32, i32, i32) {
    %c0_i32 = arith.constant 0 : i32
    %c0_i32_0 = arith.constant 0 : i32
    %c0_i32_1 = arith.constant 0 : i32
    return %arg0, %c0_i32, %c0_i32_0 : i32, i32, i32
  }
  func.func @transform_2(%arg0: i32) -> (i32, i32, i32) {
    %c0_i32 = arith.constant 0 : i32
    %c0_i32_0 = arith.constant 0 : i32
    %c0_i32_1 = arith.constant 0 : i32
    return %arg0, %c0_i32, %c0_i32_0 : i32, i32, i32
  }
  func.func @transform_3(%arg0: i32) -> (i32, i32) {
    %c0_i32 = arith.constant 0 : i32
    %c0_i32_0 = arith.constant 0 : i32
    %c0_i32_1 = arith.constant 0 : i32
    return %c0_i32, %c0_i32_0 : i32, i32
  }
  func.func @transform_4(%arg0: i32) -> (i32, i32) {
    %c0_i32 = arith.constant 0 : i32
    %c0_i32_0 = arith.constant 0 : i32
    %c0_i32_1 = arith.constant 0 : i32
    return %c0_i32, %c0_i32_0 : i32, i32
  }
  func.func @transform_5(%arg0: i32) -> (i32, i32) {
    %c0_i32 = arith.constant 0 : i32
    %c0_i32_0 = arith.constant 0 : i32
    %c0_i32_1 = arith.constant 0 : i32
    return %c0_i32, %c0_i32_0 : i32, i32
  }
  func.func @transform_6(%arg0: i32) -> (i32, i32, i32) {
    %c0_i32 = arith.constant 0 : i32
    %c0_i32_0 = arith.constant 0 : i32
    %c0_i32_1 = arith.constant 0 : i32
    return %arg0, %c0_i32, %c0_i32_0 : i32, i32, i32
  }
  func.func @transform_7(%arg0: i32) -> (i32, i32, i32) {
    %c0_i32 = arith.constant 0 : i32
    %c0_i32_0 = arith.constant 0 : i32
    %c0_i32_1 = arith.constant 0 : i32
    return %arg0, %c0_i32, %c0_i32_0 : i32, i32, i32
  }
}

</mosaic_0001>

<llo_original>
// kernel: tpu_custom_call.1
$region0: #{tpu_custom_call.1}
  #allocation0 [shape = 'u32[]', space=smem, size = 0x4, offset = 0x4, fixed_abs, tag = 'smem constant byte address 0x4 - core index']
  #allocation1 [shape = 'u32[144,128]{1,0:T(1,128)}', space=vmem, size = 0x12000, scoped, tag = 'internal scratch']
  %s0 = inlined_call_operand.vmem [shape: bf16[2,128,128], index: 0, kind: input, shape index: {}]
  %s1 = inlined_call_operand.vmem [shape: bf16[2,128,6], index: 1, kind: input, shape index: {}]
  %s2 = inlined_call_operand.hbm [shape: f32[2,128,128], index: 2, kind: input, shape index: {}]
  %s3 = inlined_call_operand.hbm [shape: bf16[896,128], index: 3, kind: input, shape index: {}]
  %s4 = inlined_call_operand.vmem [shape: f32[1,128], index: 4, kind: input, shape index: {}]
  %s5 = inlined_call_operand.vmem [shape: f32[1,128], index: 5, kind: input, shape index: {}]
  %s6 = inlined_call_operand.hbm [shape: bf16[2,128,128], index: 6, kind: output, shape index: {0}]
  %s7 = inlined_call_operand.hbm [shape: f32[2,1,128], index: 7, kind: output, shape index: {1}]
  %8 = xla_tuple %s6, %s7
  %s9 = sld [smem:[#allocation0]]
  $region73: #{tpu_custom_call.1} parent=0
    _
  %s11 = ssub.s32 1, %s9
  %s12 = scalar_select 0, %s11, %s9
  $region1: #{tpu_custom_call.1} parent=0
    #allocation2 [shape = 'u8[131072]{0}', space=vmem, size = 0x20000, scoped, tag = 'input window, operand 2']
    #allocation3 [shape = 's32[2]{0}', space=sflag, size = 0x8, scoped, tag = 'scoped memory for tpu_custom_call.1']
    #allocation4 [shape = 's32[2]{0}', space=sflag, size = 0x8, scoped, tag = 'scoped memory for tpu_custom_call.1']
    #allocation5 [shape = 'u8[229376]{0}', space=vmem, size = 0x38000, scoped, tag = 'input window, operand 3, single buffered']
    #allocation6 [shape = 's32[1]{0}', space=sflag, size = 0x4, scoped, tag = 'scoped memory for tpu_custom_call.1']
    #allocation7 [shape = 'u8[65536]{0}', space=vmem, size = 0x10000, scoped, tag = 'output window, operand 0']
    #allocation8 [shape = 'u8[1024]{0}', space=vmem, size = 0x400, scoped, tag = 'output window, operand 1']
    #allocation9 [shape = 's32[2]{0}', space=sflag, size = 0x8, scoped, tag = 'scoped memory for tpu_custom_call.1']
    %13 = vsyncpa [#allocation3], 0
    %s14 = scalar_lea.sflag [#allocation3], 1
    %15 = vsyncpa %s14, 0
    %16 = vsyncpa [#allocation6], 0
    %17 = vsyncpa [#allocation4], 0
    %s18 = scalar_lea.sflag [#allocation4], 1
    %19 = vsyncpa %s18, 0
    %20 = vsyncpa [#allocation9], 0
    %s21 = scalar_lea.sflag [#allocation9], 1
    %22 = vsyncpa %s21, 0
    loop: start=0, step=1, limit=4
    $region2: #{tpu_custom_call.1} parent=1 // loop_pre_header
      _
    $region3: #{tpu_custom_call.1} parent=1 // loop_header
      %s24 = sphi 0, %s28
      %p25 = scmp.ge.s32.totalorder %s24, 4
      %s34 = sphi 0, %s36
      %s37 = sphi 0, %s34
      %s38 = sphi 0, %s37
      %s54 = sphi 0, %s38
      %s60 = sphi 0, %s62
      %s63 = sphi 0, %s60
      %s64 = sphi 0, %s63
      %s80 = sphi 0, %s64
      %s86 = sphi 0, %s88
      %s89 = sphi 0, %s86
      %s90 = sphi 0, %s89
      %s106 = sphi 0, %s90
      %s110 = sphi 0, %s110
      %s112 = sphi 0, %s110
      %s113 = sphi 0, %s112
      %s127 = sphi 0, %s113
      %s131 = sphi 0, %s131
      %s133 = sphi 0, %s131
      %s134 = sphi 0, %s133
      %s148 = sphi 0, %s134
      %s152 = sphi 0, %s152
      %s154 = sphi 0, %s152
      %s155 = sphi 0, %s154
      %s169 = sphi 0, %s155
      %s175 = sphi 0, %s177
      %s178 = sphi 0, %s175
      %s179 = sphi 0, %s178
      %s195 = sphi 0, %s179
      %s201 = sphi 0, %s203
      %s204 = sphi 0, %s201
      %s205 = sphi 0, %s204
      %s221 = sphi 0, %s205
    $region4: #{tpu_custom_call.1} parent=1 // loop_header_branch
      %27 = sbr.rel (%p25) target = $region8
    $region5: #{tpu_custom_call.1} parent=1 // loop_body
      %s29 = ssub.s32 %s24, 1
      %s30 = ssub.s32 %s24, 2
      %s31 = sadd.s32 %s24, 1
      %s32 = ssub.s32 %s24, %s31
      %p33 = scmp.eq.s32.totalorder %s32, 0
      %s35 = sadd.s32 %s34, 1
      %s36 = scalar_select %p33, %s34, %s35
      %p39 = pneg %p33
      %p40 = scmp.eq.s32.totalorder %s24, 1
      %p41 = por %p39, %p40
      %p42 = scmp.ne.s32.totalorder %s34, %s37
      %p43 = scmp.eq.s32.totalorder %s24, 0
      %p44 = por %p42, %p43
      %p45 = scmp.ne.s32.totalorder %s34, %s37
      %p46 = scmp.eq.s32.totalorder %s29, 1
      %p47 = por %p45, %p46
      %p48 = scmp.ne.s32.totalorder %s37, %s38
      %p49 = scmp.eq.s32.totalorder %s29, 0
      %p50 = por %p48, %p49
      %p51 = scmp.ne.s32.totalorder %s37, %s38
      %p52 = scmp.eq.s32.totalorder %s30, 1
      %p53 = por %p51, %p52
      %p55 = scmp.ne.s32.totalorder %s38, %s54
      %p56 = scmp.eq.s32.totalorder %s30, 0
      %p57 = por %p55, %p56
      %s58 = ssub.s32 %s24, %s31
      %p59 = scmp.eq.s32.totalorder %s58, 0
      %s61 = sadd.s32 %s60, 1
      %s62 = scalar_select %p59, %s60, %s61
      %p65 = pneg %p59
      %p66 = scmp.eq.s32.totalorder %s24, 1
      %p67 = por %p65, %p66
      %p68 = scmp.ne.s32.totalorder %s60, %s63
      %p69 = scmp.eq.s32.totalorder %s24, 0
      %p70 = por %p68, %p69
      %p71 = scmp.ne.s32.totalorder %s60, %s63
      %p72 = scmp.eq.s32.totalorder %s29, 1
      %p73 = por %p71, %p72
      %p74 = scmp.ne.s32.totalorder %s63, %s64
      %p75 = scmp.eq.s32.totalorder %s29, 0
      %p76 = por %p74, %p75
      %p77 = scmp.ne.s32.totalorder %s63, %s64
      %p78 = scmp.eq.s32.totalorder %s30, 1
      %p79 = por %p77, %p78
      %p81 = scmp.ne.s32.totalorder %s64, %s80
      %p82 = scmp.eq.s32.totalorder %s30, 0
      %p83 = por %p81, %p82
      %s84 = ssub.s32 %s24, %s31
      %p85 = scmp.eq.s32.totalorder %s84, 0
      %s87 = sadd.s32 %s86, 1
      %s88 = scalar_select %p85, %s86, %s87
      %p91 = pneg %p85
      %p92 = scmp.eq.s32.totalorder %s24, 1
      %p93 = por %p91, %p92
      %p94 = scmp.ne.s32.totalorder %s86, %s89
      %p95 = scmp.eq.s32.totalorder %s24, 0
      %p96 = por %p94, %p95
      %p97 = scmp.ne.s32.totalorder %s86, %s89
      %p98 = scmp.eq.s32.totalorder %s29, 1
      %p99 = por %p97, %p98
      %p100 = scmp.ne.s32.totalorder %s89, %s90
      %p101 = scmp.eq.s32.totalorder %s29, 0
      %p102 = por %p100, %p101
      %p103 = scmp.ne.s32.totalorder %s89, %s90
      %p104 = scmp.eq.s32.totalorder %s30, 1
      %p105 = por %p103, %p104
      %p107 = scmp.ne.s32.totalorder %s90, %s106
      %p108 = scmp.eq.s32.totalorder %s30, 0
      %p109 = por %p107, %p108
      %s111 = sadd.s32 %s110, 1
      %p114 = scmp.eq.s32.totalorder %s24, 1
      %p115 = scmp.ne.s32.totalorder %s110, %s112
      %p116 = scmp.eq.s32.totalorder %s24, 0
      %p117 = por %p115, %p116
      %p118 = scmp.ne.s32.totalorder %s110, %s112
      %p119 = scmp.eq.s32.totalorder %s29, 1
      %p120 = por %p118, %p119
      %p121 = scmp.ne.s32.totalorder %s112, %s113
      %p122 = scmp.eq.s32.totalorder %s29, 0
      %p123 = por %p121, %p122
      %p124 = scmp.ne.s32.totalorder %s112, %s113
      %p125 = scmp.eq.s32.totalorder %s30, 1
      %p126 = por %p124, %p125
      %p128 = scmp.ne.s32.totalorder %s113, %s127
      %p129 = scmp.eq.s32.totalorder %s30, 0
      %p130 = por %p128, %p129
      %s132 = sadd.s32 %s131, 1
      %p135 = scmp.eq.s32.totalorder %s24, 1
      %p136 = scmp.ne.s32.totalorder %s131, %s133
      %p137 = scmp.eq.s32.totalorder %s24, 0
      %p138 = por %p136, %p137
      %p139 = scmp.ne.s32.totalorder %s131, %s133
      %p140 = scmp.eq.s32.totalorder %s29, 1
      %p141 = por %p139, %p140
      %p142 = scmp.ne.s32.totalorder %s133, %s134
      %p143 = scmp.eq.s32.totalorder %s29, 0
      %p144 = por %p142, %p143
      %p145 = scmp.ne.s32.totalorder %s133, %s134
      %p146 = scmp.eq.s32.totalorder %s30, 1
      %p147 = por %p145, %p146
      %p149 = scmp.ne.s32.totalorder %s134, %s148
      %p150 = scmp.eq.s32.totalorder %s30, 0
      %p151 = por %p149, %p150
      %s153 = sadd.s32 %s152, 1
      %p156 = scmp.eq.s32.totalorder %s24, 1
      %p157 = scmp.ne.s32.totalorder %s152, %s154
      %p158 = scmp.eq.s32.totalorder %s24, 0
      %p159 = por %p157, %p158
      %p160 = scmp.ne.s32.totalorder %s152, %s154
      %p161 = scmp.eq.s32.totalorder %s29, 1
      %p162 = por %p160, %p161
      %p163 = scmp.ne.s32.totalorder %s154, %s155
      %p164 = scmp.eq.s32.totalorder %s29, 0
      %p165 = por %p163, %p164
      %p166 = scmp.ne.s32.totalorder %s154, %s155
      %p167 = scmp.eq.s32.totalorder %s30, 1
      %p168 = por %p166, %p167
      %p170 = scmp.ne.s32.totalorder %s155, %s169
      %p171 = scmp.eq.s32.totalorder %s30, 0
      %p172 = por %p170, %p171
      %s173 = ssub.s32 %s24, %s31
      %p174 = scmp.eq.s32.totalorder %s173, 0
      %s176 = sadd.s32 %s175, 1
      %s177 = scalar_select %p174, %s175, %s176
      %p180 = pneg %p174
      %p181 = scmp.eq.s32.totalorder %s24, 1
      %p182 = por %p180, %p181
      %p183 = scmp.ne.s32.totalorder %s175, %s178
      %p184 = scmp.eq.s32.totalorder %s24, 0
      %p185 = por %p183, %p184
      %p186 = scmp.ne.s32.totalorder %s175, %s178
      %p187 = scmp.eq.s32.totalorder %s29, 1
      %p188 = por %p186, %p187
      %p189 = scmp.ne.s32.totalorder %s178, %s179
      %p190 = scmp.eq.s32.totalorder %s29, 0
      %p191 = por %p189, %p190
      %p192 = scmp.ne.s32.totalorder %s178, %s179
      %p193 = scmp.eq.s32.totalorder %s30, 1
      %p194 = por %p192, %p193
      %p196 = scmp.ne.s32.totalorder %s179, %s195
      %p197 = scmp.eq.s32.totalorder %s30, 0
      %p198 = por %p196, %p197
      %s199 = ssub.s32 %s24, %s31
      %p200 = scmp.eq.s32.totalorder %s199, 0
      %s202 = sadd.s32 %s201, 1
      %s203 = scalar_select %p200, %s201, %s202
      %p206 = pneg %p200
      %p207 = scmp.eq.s32.totalorder %s24, 1
      %p208 = por %p206, %p207
      %p209 = scmp.ne.s32.totalorder %s201, %s204
      %p210 = scmp.eq.s32.totalorder %s24, 0
      %p211 = por %p209, %p210
      %p212 = scmp.ne.s32.totalorder %s201, %s204
      %p213 = scmp.eq.s32.totalorder %s29, 1
      %p214 = por %p212, %p213
      %p215 = scmp.ne.s32.totalorder %s204, %s205
      %p216 = scmp.eq.s32.totalorder %s29, 0
      %p217 = por %p215, %p216
      %p218 = scmp.ne.s32.totalorder %s204, %s205
      %p219 = scmp.eq.s32.totalorder %s30, 1
      %p220 = por %p218, %p219
      %p222 = scmp.ne.s32.totalorder %s205, %s221
      %p223 = scmp.eq.s32.totalorder %s30, 0
      %p224 = por %p222, %p223
      %p225 = scmp.le.s32.totalorder 1, %s24
      %p226 = scmp.lt.s32.totalorder %s24, 3
      %p227 = pnand %p225, %p226
      %p228 = pneg %p227
      // Predicated region
      $region9: #{tpu_custom_call.1} parent=5 // pred_check
        _
      $region10: #{tpu_custom_call.1} parent=5 // pred_check_branch
        %230 = sbr.rel (%p227) target = $region12
      $region11: #{tpu_custom_call.1} parent=5 // pred_region
        %s231 = ssub.s32 %s24, 1
        // Predicated region
        $region13: #{tpu_custom_call.1} parent=11 // pred_check
          %p232 = pneg %p123
        $region14: #{tpu_custom_call.1} parent=11 // pred_check_branch
          %234 = sbr.rel (%p232) target = $region16
        $region15: #{tpu_custom_call.1} parent=11 // pred_region
          %s236 = ssub.s32 7168, 7168
          %237 = vsyncadd [#allocation6], %s236
          %s238 = sshll.u32 [#allocation5], 4
          %s239 = int_to_ptr.vmem [resolvable:$true] %s238
          %244 = dma.hbm_to_vmem [thread:$0]  %s3, 7168, %s239, [#allocation6], 64, 64, 4
        $region16: #{tpu_custom_call.1} parent=11 // pred_fallthru
          _
        // Predicated region
        $region17: #{tpu_custom_call.1} parent=11 // pred_check
          %p245 = pneg %p144
        $region18: #{tpu_custom_call.1} parent=11 // pred_check_branch
          %247 = sbr.rel (%p245) target = $region20
        $region19: #{tpu_custom_call.1} parent=11 // pred_region
          _
        $region20: #{tpu_custom_call.1} parent=11 // pred_fallthru
          _
        // Predicated region
        $region21: #{tpu_custom_call.1} parent=11 // pred_check
          %p248 = pneg %p165
        $region22: #{tpu_custom_call.1} parent=11 // pred_check_branch
          %250 = sbr.rel (%p248) target = $region24
        $region23: #{tpu_custom_call.1} parent=11 // pred_region
          _
        $region24: #{tpu_custom_call.1} parent=11 // pred_fallthru
          _
      $region12: #{tpu_custom_call.1} parent=5 // pred_fallthru
        _
      %p251 = scmp.lt.s32.totalorder %s24, 2
      // Predicated region
      $region25: #{tpu_custom_call.1} parent=5 // pred_check
        %p252 = pneg %p251
      $region26: #{tpu_custom_call.1} parent=5 // pred_check_branch
        %254 = sbr.rel (%p252) target = $region28
      $region27: #{tpu_custom_call.1} parent=5 // pred_region
        // Predicated region
        $region29: #{tpu_custom_call.1} parent=27 // pred_check
          %p255 = pneg %p44
        $region30: #{tpu_custom_call.1} parent=27 // pred_check_branch
          %257 = sbr.rel (%p255) target = $region32
        $region31: #{tpu_custom_call.1} parent=27 // pred_region
          %p258 = scmp.lt.s32.totalorder %s24, 1
          %s259 = scalar_select %p258, %s24, 1
          %s260 = smul.addr %s259, 16
          %s261 = smul.addr %s260, 4
          %s262 = scalar_lea.vmem %s0, %s261
        $region32: #{tpu_custom_call.1} parent=27 // pred_fallthru
          _
        // Predicated region
        $region33: #{tpu_custom_call.1} parent=27 // pred_check
          %p263 = pneg %p70
        $region34: #{tpu_custom_call.1} parent=27 // pred_check_branch
          %265 = sbr.rel (%p263) target = $region36
        $region35: #{tpu_custom_call.1} parent=27 // pred_region
          %p266 = scmp.lt.s32.totalorder %s24, 1
          %s267 = scalar_select %p266, %s24, 1
          %s268 = smul.addr %s267, 16
          %s269 = smul.addr %s268, 4
          %s270 = scalar_lea.vmem %s1, %s269
        $region36: #{tpu_custom_call.1} parent=27 // pred_fallthru
          _
        // Predicated region
        $region37: #{tpu_custom_call.1} parent=27 // pred_check
          %p271 = pneg %p96
        $region38: #{tpu_custom_call.1} parent=27 // pred_check_branch
          %273 = sbr.rel (%p271) target = $region40
        $region39: #{tpu_custom_call.1} parent=27 // pred_region
          %s274 = sand.u32 %s86, 1
          %s275 = scalar_lea.sflag [#allocation3], %s274
          %s276 = sand.u32 %s86, 1
          %s277 = smul.addr %s276, 128
          %s278 = scalar_lea.vmem [#allocation2], %s277
          %s280 = ssub.s32 2048, 2048
          %281 = vsyncadd %s275, %s280
          %s282 = smul.addr %s24, 16
          %s283 = smul.addr %s282, 128
          %s284 = scalar_lea.hbm %s2, %s283
          %s285 = sshll.u32 %s278, 4
          %s286 = int_to_ptr.vmem [resolvable:$true] %s285
          %291 = dma.hbm_to_vmem [thread:$0]  %s284, 2048, %s286, %s275, 128, 128, 8
        $region40: #{tpu_custom_call.1} parent=27 // pred_fallthru
          _
      $region28: #{tpu_custom_call.1} parent=5 // pred_fallthru
        _
      %p292 = scmp.le.s32.totalorder 1, %s24
      %p293 = scmp.lt.s32.totalorder %s24, 3
      %p294 = pnand %p292, %p293
      %p295 = pneg %p294
      // Predicated region
      $region41: #{tpu_custom_call.1} parent=5 // pred_check
        _
      $region42: #{tpu_custom_call.1} parent=5 // pred_check_branch
        %297 = sbr.rel (%p294) target = $region44
      $region43: #{tpu_custom_call.1} parent=5 // pred_region
        %s298 = ssub.s32 %s24, 1
        %s299 = sand.u32 %s89, 1
        %s300 = scalar_lea.sflag [#allocation3], %s299
        %s301 = sand.u32 %s89, 1
        %s302 = smul.addr %s301, 128
        %s303 = scalar_lea.vmem [#allocation2], %s302
        // Predicated region
        $region45: #{tpu_custom_call.1} parent=43 // pred_check
          %p304 = pneg %p102
        $region46: #{tpu_custom_call.1} parent=43 // pred_check_branch
          %306 = sbr.rel (%p304) target = $region48
        $region47: #{tpu_custom_call.1} parent=43 // pred_region
          %307 = dma.done %s300, 2048
        $region48: #{tpu_custom_call.1} parent=43 // pred_fallthru
          _
        // Predicated region
        $region49: #{tpu_custom_call.1} parent=43 // pred_check
          %p308 = pneg %p123
        $region50: #{tpu_custom_call.1} parent=43 // pred_check_branch
          %310 = sbr.rel (%p308) target = $region52
        $region51: #{tpu_custom_call.1} parent=43 // pred_region
          %311 = dma.done [#allocation6], 7168
        $region52: #{tpu_custom_call.1} parent=43 // pred_fallthru
          _
        %p312 = scmp.lt.s32.totalorder %s29, 1
        %s313 = scalar_select %p312, %s29, 1
        %s314 = smul.addr %s313, 16
        %s315 = smul.addr %s314, 4
        %s316 = scalar_lea.vmem %s0, %s315
        %p317 = pneg %p50
        %p318 = pneg %p47
        %p319 = scmp.lt.s32.totalorder %s29, 1
        %s320 = scalar_select %p319, %s29, 1
        %s321 = smul.addr %s320, 16
        %s322 = smul.addr %s321, 4
        %s323 = scalar_lea.vmem %s1, %s322
        %p324 = pneg %p76
        %p325 = pneg %p73
        %s326 = sand.u32 %s89, 1
        %s327 = scalar_lea.sflag [#allocation3], %s326
        %s328 = sand.u32 %s89, 1
        %s329 = smul.addr %s328, 128
        %s330 = scalar_lea.vmem [#allocation2], %s329
        %p331 = pneg %p102
        %p332 = pneg %p99
        %p333 = pneg %p123
        %p334 = pneg %p120
        %p335 = pneg %p144
        %p336 = pneg %p141
        %p337 = pneg %p165
        %p338 = pneg %p162
        %p339 = pneg %p191
        %p340 = pneg %p188
        %s341 = sand.u32 %s178, 1
        %s342 = scalar_lea.sflag [#allocation4], %s341
        %s343 = sand.u32 %s178, 1
        %s344 = smul.addr %s343, 64
        %s345 = scalar_lea.vmem [#allocation7], %s344
        %p346 = pneg %p217
        %p347 = pneg %p214
        %s348 = sand.u32 %s204, 1
        %s349 = scalar_lea.sflag [#allocation9], %s348
        %s350 = sand.u32 %s204, 1
        %s351 = scalar_lea.vmem [#allocation8], %s350
        %p352 = scmp.lt.s32.totalorder %s29, 1
        %s353 = scalar_select %p352, %s29, 1
        %s354 = smul.addr %s353, 16
        %s355 = smul.addr %s354, 4
        %s356 = scalar_lea.vmem %s0, %s355
        %p357 = scmp.lt.s32.totalorder %s29, 1
        %s358 = scalar_select %p357, %s29, 1
        %s359 = smul.addr %s358, 16
        %s360 = smul.addr %s359, 4
        %s361 = scalar_lea.vmem %s1, %s360
        %v363 = vld [vmem:[%s356] sm:$0xf]
        %v364 = vld [vmem:[%s356 + $0x4] sm:$0xf]
        %v365 = vld [vmem:[%s356 + $0x8] sm:$0xf]
        %v366 = vld [vmem:[%s356 + $0xc] sm:$0xf]
        %v367 = vld [vmem:[%s356 + $0x10] sm:$0xf]
        %v368 = vld [vmem:[%s356 + $0x14] sm:$0xf]
        %v369 = vld [vmem:[%s356 + $0x18] sm:$0xf]
        %v370 = vld [vmem:[%s356 + $0x1c] sm:$0xf]
        %v371 = vld [vmem:[%s356 + $0x20] sm:$0xf]
        %v372 = vld [vmem:[%s356 + $0x24] sm:$0xf]
        %v373 = vld [vmem:[%s356 + $0x28] sm:$0xf]
        %v374 = vld [vmem:[%s356 + $0x2c] sm:$0xf]
        %v375 = vld [vmem:[%s356 + $0x30] sm:$0xf]
        %v376 = vld [vmem:[%s356 + $0x34] sm:$0xf]
        %v377 = vld [vmem:[%s356 + $0x38] sm:$0xf]
        %v378 = vld [vmem:[%s356 + $0x3c] sm:$0xf]
        %v379 = vld [vmem:[%s361] sm:$0xf]
        %v380 = vld [vmem:[%s361 + $0x4] sm:$0xf]
        %v381 = vld [vmem:[%s361 + $0x8] sm:$0xf]
        %v382 = vld [vmem:[%s361 + $0xc] sm:$0xf]
        %v383 = vld [vmem:[%s361 + $0x10] sm:$0xf]
        %v384 = vld [vmem:[%s361 + $0x14] sm:$0xf]
        %v385 = vld [vmem:[%s361 + $0x18] sm:$0xf]
        %v386 = vld [vmem:[%s361 + $0x1c] sm:$0xf]
        %v387 = vld [vmem:[%s361 + $0x20] sm:$0xf]
        %v388 = vld [vmem:[%s361 + $0x24] sm:$0xf]
        %v389 = vld [vmem:[%s361 + $0x28] sm:$0xf]
        %v390 = vld [vmem:[%s361 + $0x2c] sm:$0xf]
        %v391 = vld [vmem:[%s361 + $0x30] sm:$0xf]
        %v392 = vld [vmem:[%s361 + $0x34] sm:$0xf]
        %v393 = vld [vmem:[%s361 + $0x38] sm:$0xf]
        %v394 = vld [vmem:[%s361 + $0x3c] sm:$0xf]
        %v395 = vld [vmem:[%s303] sm:$0xff]
        %v396 = vld [vmem:[%s303 + $0x8] sm:$0xff]
        %v397 = vld [vmem:[%s303 + $0x10] sm:$0xff]
        %v398 = vld [vmem:[%s303 + $0x18] sm:$0xff]
        %v399 = vld [vmem:[%s303 + $0x20] sm:$0xff]
        %v400 = vld [vmem:[%s303 + $0x28] sm:$0xff]
        %v401 = vld [vmem:[%s303 + $0x30] sm:$0xff]
        %v402 = vld [vmem:[%s303 + $0x38] sm:$0xff]
        %v403 = vld [vmem:[%s303 + $0x40] sm:$0xff]
        %v404 = vld [vmem:[%s303 + $0x48] sm:$0xff]
        %v405 = vld [vmem:[%s303 + $0x50] sm:$0xff]
        %v406 = vld [vmem:[%s303 + $0x58] sm:$0xff]
        %v407 = vld [vmem:[%s303 + $0x60] sm:$0xff]
        %v408 = vld [vmem:[%s303 + $0x68] sm:$0xff]
        %v409 = vld [vmem:[%s303 + $0x70] sm:$0xff]
        %v410 = vld [vmem:[%s303 + $0x78] sm:$0xff]
        %412 = vset.pattern.permute.xlu0 0
        %413 = vperm.xlu0 %412, %v379
        %v414 = vpop.permute.xlu0 %413
        %v417 = vunpack.c.l.s4 839922192
        %v418 = vunpack.c.0.s8 %v417
        %v419 = vlaneseq
        %v420 = vshrl.u32 %v419, 7
        %v421 = vsub.s32 %v418, %v420
        %v422 = vrot.slane %v414, %v421
        %424 = vset.pattern.permute.xlu0 0
        %425 = vperm.xlu0 %424, %v380
        %v426 = vpop.permute.xlu0 %425
        %v429 = vunpack.c.l.s4 839922192
        %v430 = vunpack.c.0.s8 %v429
        %v431 = vlaneseq
        %v432 = vshrl.u32 %v431, 7
        %v433 = vsub.s32 %v430, %v432
        %v434 = vrot.slane %v426, %v433
        %436 = vset.pattern.permute.xlu0 0
        %437 = vperm.xlu0 %436, %v381
        %v438 = vpop.permute.xlu0 %437
        %v441 = vunpack.c.l.s4 839922192
        %v442 = vunpack.c.0.s8 %v441
        %v443 = vlaneseq
        %v444 = vshrl.u32 %v443, 7
        %v445 = vsub.s32 %v442, %v444
        %v446 = vrot.slane %v438, %v445
        %448 = vset.pattern.permute.xlu0 0
        %449 = vperm.xlu0 %448, %v382
        %v450 = vpop.permute.xlu0 %449
        %v453 = vunpack.c.l.s4 839922192
        %v454 = vunpack.c.0.s8 %v453
        %v455 = vlaneseq
        %v456 = vshrl.u32 %v455, 7
        %v457 = vsub.s32 %v454, %v456
        %v458 = vrot.slane %v450, %v457
        %460 = vset.pattern.permute.xlu0 0
        %461 = vperm.xlu0 %460, %v383
        %v462 = vpop.permute.xlu0 %461
        %v465 = vunpack.c.l.s4 839922192
        %v466 = vunpack.c.0.s8 %v465
        %v467 = vlaneseq
        %v468 = vshrl.u32 %v467, 7
        %v469 = vsub.s32 %v466, %v468
        %v470 = vrot.slane %v462, %v469
        %472 = vset.pattern.permute.xlu0 0
        %473 = vperm.xlu0 %472, %v384
        %v474 = vpop.permute.xlu0 %473
        %v477 = vunpack.c.l.s4 839922192
        %v478 = vunpack.c.0.s8 %v477
        %v479 = vlaneseq
        %v480 = vshrl.u32 %v479, 7
        %v481 = vsub.s32 %v478, %v480
        %v482 = vrot.slane %v474, %v481
        %484 = vset.pattern.permute.xlu0 0
        %485 = vperm.xlu0 %484, %v385
        %v486 = vpop.permute.xlu0 %485
        %v489 = vunpack.c.l.s4 839922192
        %v490 = vunpack.c.0.s8 %v489
        %v491 = vlaneseq
        %v492 = vshrl.u32 %v491, 7
        %v493 = vsub.s32 %v490, %v492
        %v494 = vrot.slane %v486, %v493
        %496 = vset.pattern.permute.xlu0 0
        %497 = vperm.xlu0 %496, %v386
        %v498 = vpop.permute.xlu0 %497
        %v501 = vunpack.c.l.s4 839922192
        %v502 = vunpack.c.0.s8 %v501
        %v503 = vlaneseq
        %v504 = vshrl.u32 %v503, 7
        %v505 = vsub.s32 %v502, %v504
        %v506 = vrot.slane %v498, %v505
        %508 = vset.pattern.permute.xlu0 0
        %509 = vperm.xlu0 %508, %v387
        %v510 = vpop.permute.xlu0 %509
        %v513 = vunpack.c.l.s4 839922192
        %v514 = vunpack.c.0.s8 %v513
        %v515 = vlaneseq
        %v516 = vshrl.u32 %v515, 7
        %v517 = vsub.s32 %v514, %v516
        %v518 = vrot.slane %v510, %v517
        %520 = vset.pattern.permute.xlu0 0
        %521 = vperm.xlu0 %520, %v388
        %v522 = vpop.permute.xlu0 %521
        %v525 = vunpack.c.l.s4 839922192
        %v526 = vunpack.c.0.s8 %v525
        %v527 = vlaneseq
        %v528 = vshrl.u32 %v527, 7
        %v529 = vsub.s32 %v526, %v528
        %v530 = vrot.slane %v522, %v529
        %532 = vset.pattern.permute.xlu0 0
        %533 = vperm.xlu0 %532, %v389
        %v534 = vpop.permute.xlu0 %533
        %v537 = vunpack.c.l.s4 839922192
        %v538 = vunpack.c.0.s8 %v537
        %v539 = vlaneseq
        %v540 = vshrl.u32 %v539, 7
        %v541 = vsub.s32 %v538, %v540
        %v542 = vrot.slane %v534, %v541
        %544 = vset.pattern.permute.xlu0 0
        %545 = vperm.xlu0 %544, %v390
        %v546 = vpop.permute.xlu0 %545
        %v549 = vunpack.c.l.s4 839922192
        %v550 = vunpack.c.0.s8 %v549
        %v551 = vlaneseq
        %v552 = vshrl.u32 %v551, 7
        %v553 = vsub.s32 %v550, %v552
        %v554 = vrot.slane %v546, %v553
        %556 = vset.pattern.permute.xlu0 0
        %557 = vperm.xlu0 %556, %v391
        %v558 = vpop.permute.xlu0 %557
        %v561 = vunpack.c.l.s4 839922192
        %v562 = vunpack.c.0.s8 %v561
        %v563 = vlaneseq
        %v564 = vshrl.u32 %v563, 7
        %v565 = vsub.s32 %v562, %v564
        %v566 = vrot.slane %v558, %v565
        %568 = vset.pattern.permute.xlu0 0
        %569 = vperm.xlu0 %568, %v392
        %v570 = vpop.permute.xlu0 %569
        %v573 = vunpack.c.l.s4 839922192
        %v574 = vunpack.c.0.s8 %v573
        %v575 = vlaneseq
        %v576 = vshrl.u32 %v575, 7
        %v577 = vsub.s32 %v574, %v576
        %v578 = vrot.slane %v570, %v577
        %580 = vset.pattern.permute.xlu0 0
        %581 = vperm.xlu0 %580, %v393
        %v582 = vpop.permute.xlu0 %581
        %v585 = vunpack.c.l.s4 839922192
        %v586 = vunpack.c.0.s8 %v585
        %v587 = vlaneseq
        %v588 = vshrl.u32 %v587, 7
        %v589 = vsub.s32 %v586, %v588
        %v590 = vrot.slane %v582, %v589
        %592 = vset.pattern.permute.xlu0 0
        %593 = vperm.xlu0 %592, %v394
        %v594 = vpop.permute.xlu0 %593
        %v597 = vunpack.c.l.s4 839922192
        %v598 = vunpack.c.0.s8 %v597
        %v599 = vlaneseq
        %v600 = vshrl.u32 %v599, 7
        %v601 = vsub.s32 %v598, %v600
        %v602 = vrot.slane %v594, %v601
        %v603 = vmul.bf16 %v422, %v363
        %v604 = vmul.bf16 %v434, %v364
        %v605 = vmul.bf16 %v446, %v365
        %v606 = vmul.bf16 %v458, %v366
        %v607 = vmul.bf16 %v470, %v367
        %v608 = vmul.bf16 %v482, %v368
        %v609 = vmul.bf16 %v494, %v369
        %v610 = vmul.bf16 %v506, %v370
        %v611 = vmul.bf16 %v518, %v371
        %v612 = vmul.bf16 %v530, %v372
        %v613 = vmul.bf16 %v542, %v373
        %v614 = vmul.bf16 %v554, %v374
        %v615 = vmul.bf16 %v566, %v375
        %v616 = vmul.bf16 %v578, %v376
        %v617 = vmul.bf16 %v590, %v377
        %v618 = vmul.bf16 %v602, %v378
        %619 = vset.pattern.permute.xlu0 1
        %620 = vperm.xlu0 %619, %v379
        %v621 = vpop.permute.xlu0 %620
        %v624 = vunpack.c.l.s4 839922192
        %v625 = vunpack.c.0.s8 %v624
        %v626 = vlaneseq
        %v627 = vshrl.u32 %v626, 7
        %v628 = vsub.s32 %v625, %v627
        %v629 = vrot.slane %v621, %v628
        %630 = vset.pattern.permute.xlu0 1
        %631 = vperm.xlu0 %630, %v380
        %v632 = vpop.permute.xlu0 %631
        %v635 = vunpack.c.l.s4 839922192
        %v636 = vunpack.c.0.s8 %v635
        %v637 = vlaneseq
        %v638 = vshrl.u32 %v637, 7
        %v639 = vsub.s32 %v636, %v638
        %v640 = vrot.slane %v632, %v639
        %641 = vset.pattern.permute.xlu0 1
        %642 = vperm.xlu0 %641, %v381
        %v643 = vpop.permute.xlu0 %642
        %v646 = vunpack.c.l.s4 839922192
        %v647 = vunpack.c.0.s8 %v646
        %v648 = vlaneseq
        %v649 = vshrl.u32 %v648, 7
        %v650 = vsub.s32 %v647, %v649
        %v651 = vrot.slane %v643, %v650
        %652 = vset.pattern.permute.xlu0 1
        %653 = vperm.xlu0 %652, %v382
        %v654 = vpop.permute.xlu0 %653
        %v657 = vunpack.c.l.s4 839922192
        %v658 = vunpack.c.0.s8 %v657
        %v659 = vlaneseq
        %v660 = vshrl.u32 %v659, 7
        %v661 = vsub.s32 %v658, %v660
        %v662 = vrot.slane %v654, %v661
        %663 = vset.pattern.permute.xlu0 1
        %664 = vperm.xlu0 %663, %v383
        %v665 = vpop.permute.xlu0 %664
        %v668 = vunpack.c.l.s4 839922192
        %v669 = vunpack.c.0.s8 %v668
        %v670 = vlaneseq
        %v671 = vshrl.u32 %v670, 7
        %v672 = vsub.s32 %v669, %v671
        %v673 = vrot.slane %v665, %v672
        %674 = vset.pattern.permute.xlu0 1
        %675 = vperm.xlu0 %674, %v384
        %v676 = vpop.permute.xlu0 %675
        %v679 = vunpack.c.l.s4 839922192
        %v680 = vunpack.c.0.s8 %v679
        %v681 = vlaneseq
        %v682 = vshrl.u32 %v681, 7
        %v683 = vsub.s32 %v680, %v682
        %v684 = vrot.slane %v676, %v683
        %685 = vset.pattern.permute.xlu0 1
        %686 = vperm.xlu0 %685, %v385
        %v687 = vpop.permute.xlu0 %686
        %v690 = vunpack.c.l.s4 839922192
        %v691 = vunpack.c.0.s8 %v690
        %v692 = vlaneseq
        %v693 = vshrl.u32 %v692, 7
        %v694 = vsub.s32 %v691, %v693
        %v695 = vrot.slane %v687, %v694
        %696 = vset.pattern.permute.xlu0 1
        %697 = vperm.xlu0 %696, %v386
        %v698 = vpop.permute.xlu0 %697
        %v701 = vunpack.c.l.s4 839922192
        %v702 = vunpack.c.0.s8 %v701
        %v703 = vlaneseq
        %v704 = vshrl.u32 %v703, 7
        %v705 = vsub.s32 %v702, %v704
        %v706 = vrot.slane %v698, %v705
        %707 = vset.pattern.permute.xlu0 1
        %708 = vperm.xlu0 %707, %v387
        %v709 = vpop.permute.xlu0 %708
        %v712 = vunpack.c.l.s4 839922192
        %v713 = vunpack.c.0.s8 %v712
        %v714 = vlaneseq
        %v715 = vshrl.u32 %v714, 7
        %v716 = vsub.s32 %v713, %v715
        %v717 = vrot.slane %v709, %v716
        %718 = vset.pattern.permute.xlu0 1
        %719 = vperm.xlu0 %718, %v388
        %v720 = vpop.permute.xlu0 %719
        %v723 = vunpack.c.l.s4 839922192
        %v724 = vunpack.c.0.s8 %v723
        %v725 = vlaneseq
        %v726 = vshrl.u32 %v725, 7
        %v727 = vsub.s32 %v724, %v726
        %v728 = vrot.slane %v720, %v727
        %729 = vset.pattern.permute.xlu0 1
        %730 = vperm.xlu0 %729, %v389
        %v731 = vpop.permute.xlu0 %730
        %v734 = vunpack.c.l.s4 839922192
        %v735 = vunpack.c.0.s8 %v734
        %v736 = vlaneseq
        %v737 = vshrl.u32 %v736, 7
        %v738 = vsub.s32 %v735, %v737
        %v739 = vrot.slane %v731, %v738
        %740 = vset.pattern.permute.xlu0 1
        %741 = vperm.xlu0 %740, %v390
        %v742 = vpop.permute.xlu0 %741
        %v745 = vunpack.c.l.s4 839922192
        %v746 = vunpack.c.0.s8 %v745
        %v747 = vlaneseq
        %v748 = vshrl.u32 %v747, 7
        %v749 = vsub.s32 %v746, %v748
        %v750 = vrot.slane %v742, %v749
        %751 = vset.pattern.permute.xlu0 1
        %752 = vperm.xlu0 %751, %v391
        %v753 = vpop.permute.xlu0 %752
        %v756 = vunpack.c.l.s4 839922192
        %v757 = vunpack.c.0.s8 %v756
        %v758 = vlaneseq
        %v759 = vshrl.u32 %v758, 7
        %v760 = vsub.s32 %v757, %v759
        %v761 = vrot.slane %v753, %v760
        %762 = vset.pattern.permute.xlu0 1
        %763 = vperm.xlu0 %762, %v392
        %v764 = vpop.permute.xlu0 %763
        %v767 = vunpack.c.l.s4 839922192
        %v768 = vunpack.c.0.s8 %v767
        %v769 = vlaneseq
        %v770 = vshrl.u32 %v769, 7
        %v771 = vsub.s32 %v768, %v770
        %v772 = vrot.slane %v764, %v771
        %773 = vset.pattern.permute.xlu0 1
        %774 = vperm.xlu0 %773, %v393
        %v775 = vpop.permute.xlu0 %774
        %v778 = vunpack.c.l.s4 839922192
        %v779 = vunpack.c.0.s8 %v778
        %v780 = vlaneseq
        %v781 = vshrl.u32 %v780, 7
        %v782 = vsub.s32 %v779, %v781
        %v783 = vrot.slane %v775, %v782
        %784 = vset.pattern.permute.xlu0 1
        %785 = vperm.xlu0 %784, %v394
        %v786 = vpop.permute.xlu0 %785
        %v789 = vunpack.c.l.s4 839922192
        %v790 = vunpack.c.0.s8 %v789
        %v791 = vlaneseq
        %v792 = vshrl.u32 %v791, 7
        %v793 = vsub.s32 %v790, %v792
        %v794 = vrot.slane %v786, %v793
        %v795 = vmul.bf16 %v629, %v363
        %v796 = vmul.bf16 %v640, %v364
        %v797 = vmul.bf16 %v651, %v365
        %v798 = vmul.bf16 %v662, %v366
        %v799 = vmul.bf16 %v673, %v367
        %v800 = vmul.bf16 %v684, %v368
        %v801 = vmul.bf16 %v695, %v369
        %v802 = vmul.bf16 %v706, %v370
        %v803 = vmul.bf16 %v717, %v371
        %v804 = vmul.bf16 %v728, %v372
        %v805 = vmul.bf16 %v739, %v373
        %v806 = vmul.bf16 %v750, %v374
        %v807 = vmul.bf16 %v761, %v375
        %v808 = vmul.bf16 %v772, %v376
        %v809 = vmul.bf16 %v783, %v377
        %v810 = vmul.bf16 %v794, %v378
        %811 = vset.pattern.permute.xlu0 2
        %812 = vperm.xlu0 %811, %v379
        %v813 = vpop.permute.xlu0 %812
        %v816 = vunpack.c.l.s4 839922192
        %v817 = vunpack.c.0.s8 %v816
        %v818 = vlaneseq
        %v819 = vshrl.u32 %v818, 7
        %v820 = vsub.s32 %v817, %v819
        %v821 = vrot.slane %v813, %v820
        %822 = vset.pattern.permute.xlu0 2
        %823 = vperm.xlu0 %822, %v380
        %v824 = vpop.permute.xlu0 %823
        %v827 = vunpack.c.l.s4 839922192
        %v828 = vunpack.c.0.s8 %v827
        %v829 = vlaneseq
        %v830 = vshrl.u32 %v829, 7
        %v831 = vsub.s32 %v828, %v830
        %v832 = vrot.slane %v824, %v831
        %833 = vset.pattern.permute.xlu0 2
        %834 = vperm.xlu0 %833, %v381
        %v835 = vpop.permute.xlu0 %834
        %v838 = vunpack.c.l.s4 839922192
        %v839 = vunpack.c.0.s8 %v838
        %v840 = vlaneseq
        %v841 = vshrl.u32 %v840, 7
        %v842 = vsub.s32 %v839, %v841
        %v843 = vrot.slane %v835, %v842
        %844 = vset.pattern.permute.xlu0 2
        %845 = vperm.xlu0 %844, %v382
        %v846 = vpop.permute.xlu0 %845
        %v849 = vunpack.c.l.s4 839922192
        %v850 = vunpack.c.0.s8 %v849
        %v851 = vlaneseq
        %v852 = vshrl.u32 %v851, 7
        %v853 = vsub.s32 %v850, %v852
        %v854 = vrot.slane %v846, %v853
        %855 = vset.pattern.permute.xlu0 2
        %856 = vperm.xlu0 %855, %v383
        %v857 = vpop.permute.xlu0 %856
        %v860 = vunpack.c.l.s4 839922192
        %v861 = vunpack.c.0.s8 %v860
        %v862 = vlaneseq
        %v863 = vshrl.u32 %v862, 7
        %v864 = vsub.s32 %v861, %v863
        %v865 = vrot.slane %v857, %v864
        %866 = vset.pattern.permute.xlu0 2
        %867 = vperm.xlu0 %866, %v384
        %v868 = vpop.permute.xlu0 %867
        %v871 = vunpack.c.l.s4 839922192
        %v872 = vunpack.c.0.s8 %v871
        %v873 = vlaneseq
        %v874 = vshrl.u32 %v873, 7
        %v875 = vsub.s32 %v872, %v874
        %v876 = vrot.slane %v868, %v875
        %877 = vset.pattern.permute.xlu0 2
        %878 = vperm.xlu0 %877, %v385
        %v879 = vpop.permute.xlu0 %878
        %v882 = vunpack.c.l.s4 839922192
        %v883 = vunpack.c.0.s8 %v882
        %v884 = vlaneseq
        %v885 = vshrl.u32 %v884, 7
        %v886 = vsub.s32 %v883, %v885
        %v887 = vrot.slane %v879, %v886
        %888 = vset.pattern.permute.xlu0 2
        %889 = vperm.xlu0 %888, %v386
        %v890 = vpop.permute.xlu0 %889
        %v893 = vunpack.c.l.s4 839922192
        %v894 = vunpack.c.0.s8 %v893
        %v895 = vlaneseq
        %v896 = vshrl.u32 %v895, 7
        %v897 = vsub.s32 %v894, %v896
        %v898 = vrot.slane %v890, %v897
        %899 = vset.pattern.permute.xlu0 2
        %900 = vperm.xlu0 %899, %v387
        %v901 = vpop.permute.xlu0 %900
        %v904 = vunpack.c.l.s4 839922192
        %v905 = vunpack.c.0.s8 %v904
        %v906 = vlaneseq
        %v907 = vshrl.u32 %v906, 7
        %v908 = vsub.s32 %v905, %v907
        %v909 = vrot.slane %v901, %v908
        %910 = vset.pattern.permute.xlu0 2
        %911 = vperm.xlu0 %910, %v388
        %v912 = vpop.permute.xlu0 %911
        %v915 = vunpack.c.l.s4 839922192
        %v916 = vunpack.c.0.s8 %v915
        %v917 = vlaneseq
        %v918 = vshrl.u32 %v917, 7
        %v919 = vsub.s32 %v916, %v918
        %v920 = vrot.slane %v912, %v919
        %921 = vset.pattern.permute.xlu0 2
        %922 = vperm.xlu0 %921, %v389
        %v923 = vpop.permute.xlu0 %922
        %v926 = vunpack.c.l.s4 839922192
        %v927 = vunpack.c.0.s8 %v926
        %v928 = vlaneseq
        %v929 = vshrl.u32 %v928, 7
        %v930 = vsub.s32 %v927, %v929
        %v931 = vrot.slane %v923, %v930
        %932 = vset.pattern.permute.xlu0 2
        %933 = vperm.xlu0 %932, %v390
        %v934 = vpop.permute.xlu0 %933
        %v937 = vunpack.c.l.s4 839922192
        %v938 = vunpack.c.0.s8 %v937
        %v939 = vlaneseq
        %v940 = vshrl.u32 %v939, 7
        %v941 = vsub.s32 %v938, %v940
        %v942 = vrot.slane %v934, %v941
        %943 = vset.pattern.permute.xlu0 2
        %944 = vperm.xlu0 %943, %v391
        %v945 = vpop.permute.xlu0 %944
        %v948 = vunpack.c.l.s4 839922192
        %v949 = vunpack.c.0.s8 %v948
        %v950 = vlaneseq
        %v951 = vshrl.u32 %v950, 7
        %v952 = vsub.s32 %v949, %v951
        %v953 = vrot.slane %v945, %v952
        %954 = vset.pattern.permute.xlu0 2
        %955 = vperm.xlu0 %954, %v392
        %v956 = vpop.permute.xlu0 %955
        %v959 = vunpack.c.l.s4 839922192
        %v960 = vunpack.c.0.s8 %v959
        %v961 = vlaneseq
        %v962 = vshrl.u32 %v961, 7
        %v963 = vsub.s32 %v960, %v962
        %v964 = vrot.slane %v956, %v963
        %965 = vset.pattern.permute.xlu0 2
        %966 = vperm.xlu0 %965, %v393
        %v967 = vpop.permute.xlu0 %966
        %v970 = vunpack.c.l.s4 839922192
        %v971 = vunpack.c.0.s8 %v970
        %v972 = vlaneseq
        %v973 = vshrl.u32 %v972, 7
        %v974 = vsub.s32 %v971, %v973
        %v975 = vrot.slane %v967, %v974
        %976 = vset.pattern.permute.xlu0 2
        %977 = vperm.xlu0 %976, %v394
        %v978 = vpop.permute.xlu0 %977
        %v981 = vunpack.c.l.s4 839922192
        %v982 = vunpack.c.0.s8 %v981
        %v983 = vlaneseq
        %v984 = vshrl.u32 %v983, 7
        %v985 = vsub.s32 %v982, %v984
        %v986 = vrot.slane %v978, %v985
        %v987 = vmul.bf16 %v821, %v363
        %v988 = vmul.bf16 %v832, %v364
        %v989 = vmul.bf16 %v843, %v365
        %v990 = vmul.bf16 %v854, %v366
        %v991 = vmul.bf16 %v865, %v367
        %v992 = vmul.bf16 %v876, %v368
        %v993 = vmul.bf16 %v887, %v369
        %v994 = vmul.bf16 %v898, %v370
        %v995 = vmul.bf16 %v909, %v371
        %v996 = vmul.bf16 %v920, %v372
        %v997 = vmul.bf16 %v931, %v373
        %v998 = vmul.bf16 %v942, %v374
        %v999 = vmul.bf16 %v953, %v375
        %v1000 = vmul.bf16 %v964, %v376
        %v1001 = vmul.bf16 %v975, %v377
        %v1002 = vmul.bf16 %v986, %v378
        %1003 = vset.pattern.permute.xlu0 3
        %1004 = vperm.xlu0 %1003, %v379
        %v1005 = vpop.permute.xlu0 %1004
        %v1008 = vunpack.c.l.s4 839922192
        %v1009 = vunpack.c.0.s8 %v1008
        %v1010 = vlaneseq
        %v1011 = vshrl.u32 %v1010, 7
        %v1012 = vsub.s32 %v1009, %v1011
        %v1013 = vrot.slane %v1005, %v1012
        %1014 = vset.pattern.permute.xlu0 3
        %1015 = vperm.xlu0 %1014, %v380
        %v1016 = vpop.permute.xlu0 %1015
        %v1019 = vunpack.c.l.s4 839922192
        %v1020 = vunpack.c.0.s8 %v1019
        %v1021 = vlaneseq
        %v1022 = vshrl.u32 %v1021, 7
        %v1023 = vsub.s32 %v1020, %v1022
        %v1024 = vrot.slane %v1016, %v1023
        %1025 = vset.pattern.permute.xlu0 3
        %1026 = vperm.xlu0 %1025, %v381
        %v1027 = vpop.permute.xlu0 %1026
        %v1030 = vunpack.c.l.s4 839922192
        %v1031 = vunpack.c.0.s8 %v1030
        %v1032 = vlaneseq
        %v1033 = vshrl.u32 %v1032, 7
        %v1034 = vsub.s32 %v1031, %v1033
        %v1035 = vrot.slane %v1027, %v1034
        %1036 = vset.pattern.permute.xlu0 3
        %1037 = vperm.xlu0 %1036, %v382
        %v1038 = vpop.permute.xlu0 %1037
        %v1041 = vunpack.c.l.s4 839922192
        %v1042 = vunpack.c.0.s8 %v1041
        %v1043 = vlaneseq
        %v1044 = vshrl.u32 %v1043, 7
        %v1045 = vsub.s32 %v1042, %v1044
        %v1046 = vrot.slane %v1038, %v1045
        %1047 = vset.pattern.permute.xlu0 3
        %1048 = vperm.xlu0 %1047, %v383
        %v1049 = vpop.permute.xlu0 %1048
        %v1052 = vunpack.c.l.s4 839922192
        %v1053 = vunpack.c.0.s8 %v1052
        %v1054 = vlaneseq
        %v1055 = vshrl.u32 %v1054, 7
        %v1056 = vsub.s32 %v1053, %v1055
        %v1057 = vrot.slane %v1049, %v1056
        %1058 = vset.pattern.permute.xlu0 3
        %1059 = vperm.xlu0 %1058, %v384
        %v1060 = vpop.permute.xlu0 %1059
        %v1063 = vunpack.c.l.s4 839922192
        %v1064 = vunpack.c.0.s8 %v1063
        %v1065 = vlaneseq
        %v1066 = vshrl.u32 %v1065, 7
        %v1067 = vsub.s32 %v1064, %v1066
        %v1068 = vrot.slane %v1060, %v1067
        %1069 = vset.pattern.permute.xlu0 3
        %1070 = vperm.xlu0 %1069, %v385
        %v1071 = vpop.permute.xlu0 %1070
        %v1074 = vunpack.c.l.s4 839922192
        %v1075 = vunpack.c.0.s8 %v1074
        %v1076 = vlaneseq
        %v1077 = vshrl.u32 %v1076, 7
        %v1078 = vsub.s32 %v1075, %v1077
        %v1079 = vrot.slane %v1071, %v1078
        %1080 = vset.pattern.permute.xlu0 3
        %1081 = vperm.xlu0 %1080, %v386
        %v1082 = vpop.permute.xlu0 %1081
        %v1085 = vunpack.c.l.s4 839922192
        %v1086 = vunpack.c.0.s8 %v1085
        %v1087 = vlaneseq
        %v1088 = vshrl.u32 %v1087, 7
        %v1089 = vsub.s32 %v1086, %v1088
        %v1090 = vrot.slane %v1082, %v1089
        %1091 = vset.pattern.permute.xlu0 3
        %1092 = vperm.xlu0 %1091, %v387
        %v1093 = vpop.permute.xlu0 %1092
        %v1096 = vunpack.c.l.s4 839922192
        %v1097 = vunpack.c.0.s8 %v1096
        %v1098 = vlaneseq
        %v1099 = vshrl.u32 %v1098, 7
        %v1100 = vsub.s32 %v1097, %v1099
        %v1101 = vrot.slane %v1093, %v1100
        %1102 = vset.pattern.permute.xlu0 3
        %1103 = vperm.xlu0 %1102, %v388
        %v1104 = vpop.permute.xlu0 %1103
        %v1107 = vunpack.c.l.s4 839922192
        %v1108 = vunpack.c.0.s8 %v1107
        %v1109 = vlaneseq
        %v1110 = vshrl.u32 %v1109, 7
        %v1111 = vsub.s32 %v1108, %v1110
        %v1112 = vrot.slane %v1104, %v1111
        %1113 = vset.pattern.permute.xlu0 3
        %1114 = vperm.xlu0 %1113, %v389
        %v1115 = vpop.permute.xlu0 %1114
        %v1118 = vunpack.c.l.s4 839922192
        %v1119 = vunpack.c.0.s8 %v1118
        %v1120 = vlaneseq
        %v1121 = vshrl.u32 %v1120, 7
        %v1122 = vsub.s32 %v1119, %v1121
        %v1123 = vrot.slane %v1115, %v1122
        %1124 = vset.pattern.permute.xlu0 3
        %1125 = vperm.xlu0 %1124, %v390
        %v1126 = vpop.permute.xlu0 %1125
        %v1129 = vunpack.c.l.s4 839922192
        %v1130 = vunpack.c.0.s8 %v1129
        %v1131 = vlaneseq
        %v1132 = vshrl.u32 %v1131, 7
        %v1133 = vsub.s32 %v1130, %v1132
        %v1134 = vrot.slane %v1126, %v1133
        %1135 = vset.pattern.permute.xlu0 3
        %1136 = vperm.xlu0 %1135, %v391
        %v1137 = vpop.permute.xlu0 %1136
        %v1140 = vunpack.c.l.s4 839922192
        %v1141 = vunpack.c.0.s8 %v1140
        %v1142 = vlaneseq
        %v1143 = vshrl.u32 %v1142, 7
        %v1144 = vsub.s32 %v1141, %v1143
        %v1145 = vrot.slane %v1137, %v1144
        %1146 = vset.pattern.permute.xlu0 3
        %1147 = vperm.xlu0 %1146, %v392
        %v1148 = vpop.permute.xlu0 %1147
        %v1151 = vunpack.c.l.s4 839922192
        %v1152 = vunpack.c.0.s8 %v1151
        %v1153 = vlaneseq
        %v1154 = vshrl.u32 %v1153, 7
        %v1155 = vsub.s32 %v1152, %v1154
        %v1156 = vrot.slane %v1148, %v1155
        %1157 = vset.pattern.permute.xlu0 3
        %1158 = vperm.xlu0 %1157, %v393
        %v1159 = vpop.permute.xlu0 %1158
        %v1162 = vunpack.c.l.s4 839922192
        %v1163 = vunpack.c.0.s8 %v1162
        %v1164 = vlaneseq
        %v1165 = vshrl.u32 %v1164, 7
        %v1166 = vsub.s32 %v1163, %v1165
        %v1167 = vrot.slane %v1159, %v1166
        %1168 = vset.pattern.permute.xlu0 3
        %1169 = vperm.xlu0 %1168, %v394
        %v1170 = vpop.permute.xlu0 %1169
        %v1173 = vunpack.c.l.s4 839922192
        %v1174 = vunpack.c.0.s8 %v1173
        %v1175 = vlaneseq
        %v1176 = vshrl.u32 %v1175, 7
        %v1177 = vsub.s32 %v1174, %v1176
        %v1178 = vrot.slane %v1170, %v1177
        %v1179 = vmul.bf16 %v1013, %v363
        %v1180 = vmul.bf16 %v1024, %v364
        %v1181 = vmul.bf16 %v1035, %v365
        %v1182 = vmul.bf16 %v1046, %v366
        %v1183 = vmul.bf16 %v1057, %v367
        %v1184 = vmul.bf16 %v1068, %v368
        %v1185 = vmul.bf16 %v1079, %v369
        %v1186 = vmul.bf16 %v1090, %v370
        %v1187 = vmul.bf16 %v1101, %v371
        %v1188 = vmul.bf16 %v1112, %v372
        %v1189 = vmul.bf16 %v1123, %v373
        %v1190 = vmul.bf16 %v1134, %v374
        %v1191 = vmul.bf16 %v1145, %v375
        %v1192 = vmul.bf16 %v1156, %v376
        %v1193 = vmul.bf16 %v1167, %v377
        %v1194 = vmul.bf16 %v1178, %v378
        %1195 = vset.pattern.permute.xlu0 4
        %1196 = vperm.xlu0 %1195, %v379
        %v1197 = vpop.permute.xlu0 %1196
        %v1200 = vunpack.c.l.s4 839922192
        %v1201 = vunpack.c.0.s8 %v1200
        %v1202 = vlaneseq
        %v1203 = vshrl.u32 %v1202, 7
        %v1204 = vsub.s32 %v1201, %v1203
        %v1205 = vrot.slane %v1197, %v1204
        %1206 = vset.pattern.permute.xlu0 4
        %1207 = vperm.xlu0 %1206, %v380
        %v1208 = vpop.permute.xlu0 %1207
        %v1211 = vunpack.c.l.s4 839922192
        %v1212 = vunpack.c.0.s8 %v1211
        %v1213 = vlaneseq
        %v1214 = vshrl.u32 %v1213, 7
        %v1215 = vsub.s32 %v1212, %v1214
        %v1216 = vrot.slane %v1208, %v1215
        %1217 = vset.pattern.permute.xlu0 4
        %1218 = vperm.xlu0 %1217, %v381
        %v1219 = vpop.permute.xlu0 %1218
        %v1222 = vunpack.c.l.s4 839922192
        %v1223 = vunpack.c.0.s8 %v1222
        %v1224 = vlaneseq
        %v1225 = vshrl.u32 %v1224, 7
        %v1226 = vsub.s32 %v1223, %v1225
        %v1227 = vrot.slane %v1219, %v1226
        %1228 = vset.pattern.permute.xlu0 4
        %1229 = vperm.xlu0 %1228, %v382
        %v1230 = vpop.permute.xlu0 %1229
        %v1233 = vunpack.c.l.s4 839922192
        %v1234 = vunpack.c.0.s8 %v1233
        %v1235 = vlaneseq
        %v1236 = vshrl.u32 %v1235, 7
        %v1237 = vsub.s32 %v1234, %v1236
        %v1238 = vrot.slane %v1230, %v1237
        %1239 = vset.pattern.permute.xlu0 4
        %1240 = vperm.xlu0 %1239, %v383
        %v1241 = vpop.permute.xlu0 %1240
        %v1244 = vunpack.c.l.s4 839922192
        %v1245 = vunpack.c.0.s8 %v1244
        %v1246 = vlaneseq
        %v1247 = vshrl.u32 %v1246, 7
        %v1248 = vsub.s32 %v1245, %v1247
        %v1249 = vrot.slane %v1241, %v1248
        %1250 = vset.pattern.permute.xlu0 4
        %1251 = vperm.xlu0 %1250, %v384
        %v1252 = vpop.permute.xlu0 %1251
        %v1255 = vunpack.c.l.s4 839922192
        %v1256 = vunpack.c.0.s8 %v1255
        %v1257 = vlaneseq
        %v1258 = vshrl.u32 %v1257, 7
        %v1259 = vsub.s32 %v1256, %v1258
        %v1260 = vrot.slane %v1252, %v1259
        %1261 = vset.pattern.permute.xlu0 4
        %1262 = vperm.xlu0 %1261, %v385
        %v1263 = vpop.permute.xlu0 %1262
        %v1266 = vunpack.c.l.s4 839922192
        %v1267 = vunpack.c.0.s8 %v1266
        %v1268 = vlaneseq
        %v1269 = vshrl.u32 %v1268, 7
        %v1270 = vsub.s32 %v1267, %v1269
        %v1271 = vrot.slane %v1263, %v1270
        %1272 = vset.pattern.permute.xlu0 4
        %1273 = vperm.xlu0 %1272, %v386
        %v1274 = vpop.permute.xlu0 %1273
        %v1277 = vunpack.c.l.s4 839922192
        %v1278 = vunpack.c.0.s8 %v1277
        %v1279 = vlaneseq
        %v1280 = vshrl.u32 %v1279, 7
        %v1281 = vsub.s32 %v1278, %v1280
        %v1282 = vrot.slane %v1274, %v1281
        %1283 = vset.pattern.permute.xlu0 4
        %1284 = vperm.xlu0 %1283, %v387
        %v1285 = vpop.permute.xlu0 %1284
        %v1288 = vunpack.c.l.s4 839922192
        %v1289 = vunpack.c.0.s8 %v1288
        %v1290 = vlaneseq
        %v1291 = vshrl.u32 %v1290, 7
        %v1292 = vsub.s32 %v1289, %v1291
        %v1293 = vrot.slane %v1285, %v1292
        %1294 = vset.pattern.permute.xlu0 4
        %1295 = vperm.xlu0 %1294, %v388
        %v1296 = vpop.permute.xlu0 %1295
        %v1299 = vunpack.c.l.s4 839922192
        %v1300 = vunpack.c.0.s8 %v1299
        %v1301 = vlaneseq
        %v1302 = vshrl.u32 %v1301, 7
        %v1303 = vsub.s32 %v1300, %v1302
        %v1304 = vrot.slane %v1296, %v1303
        %1305 = vset.pattern.permute.xlu0 4
        %1306 = vperm.xlu0 %1305, %v389
        %v1307 = vpop.permute.xlu0 %1306
        %v1310 = vunpack.c.l.s4 839922192
        %v1311 = vunpack.c.0.s8 %v1310
        %v1312 = vlaneseq
        %v1313 = vshrl.u32 %v1312, 7
        %v1314 = vsub.s32 %v1311, %v1313
        %v1315 = vrot.slane %v1307, %v1314
        %1316 = vset.pattern.permute.xlu0 4
        %1317 = vperm.xlu0 %1316, %v390
        %v1318 = vpop.permute.xlu0 %1317
        %v1321 = vunpack.c.l.s4 839922192
        %v1322 = vunpack.c.0.s8 %v1321
        %v1323 = vlaneseq
        %v1324 = vshrl.u32 %v1323, 7
        %v1325 = vsub.s32 %v1322, %v1324
        %v1326 = vrot.slane %v1318, %v1325
        %1327 = vset.pattern.permute.xlu0 4
        %1328 = vperm.xlu0 %1327, %v391
        %v1329 = vpop.permute.xlu0 %1328
        %v1332 = vunpack.c.l.s4 839922192
        %v1333 = vunpack.c.0.s8 %v1332
        %v1334 = vlaneseq
        %v1335 = vshrl.u32 %v1334, 7
        %v1336 = vsub.s32 %v1333, %v1335
        %v1337 = vrot.slane %v1329, %v1336
        %1338 = vset.pattern.permute.xlu0 4
        %1339 = vperm.xlu0 %1338, %v392
        %v1340 = vpop.permute.xlu0 %1339
        %v1343 = vunpack.c.l.s4 839922192
        %v1344 = vunpack.c.0.s8 %v1343
        %v1345 = vlaneseq
        %v1346 = vshrl.u32 %v1345, 7
        %v1347 = vsub.s32 %v1344, %v1346
        %v1348 = vrot.slane %v1340, %v1347
        %1349 = vset.pattern.permute.xlu0 4
        %1350 = vperm.xlu0 %1349, %v393
        %v1351 = vpop.permute.xlu0 %1350
        %v1354 = vunpack.c.l.s4 839922192
        %v1355 = vunpack.c.0.s8 %v1354
        %v1356 = vlaneseq
        %v1357 = vshrl.u32 %v1356, 7
        %v1358 = vsub.s32 %v1355, %v1357
        %v1359 = vrot.slane %v1351, %v1358
        %1360 = vset.pattern.permute.xlu0 4
        %1361 = vperm.xlu0 %1360, %v394
        %v1362 = vpop.permute.xlu0 %1361
        %v1365 = vunpack.c.l.s4 839922192
        %v1366 = vunpack.c.0.s8 %v1365
        %v1367 = vlaneseq
        %v1368 = vshrl.u32 %v1367, 7
        %v1369 = vsub.s32 %v1366, %v1368
        %v1370 = vrot.slane %v1362, %v1369
        %v1371 = vmul.bf16 %v1205, %v363
        %v1372 = vmul.bf16 %v1216, %v364
        %v1373 = vmul.bf16 %v1227, %v365
        %v1374 = vmul.bf16 %v1238, %v366
        %v1375 = vmul.bf16 %v1249, %v367
        %v1376 = vmul.bf16 %v1260, %v368
        %v1377 = vmul.bf16 %v1271, %v369
        %v1378 = vmul.bf16 %v1282, %v370
        %v1379 = vmul.bf16 %v1293, %v371
        %v1380 = vmul.bf16 %v1304, %v372
        %v1381 = vmul.bf16 %v1315, %v373
        %v1382 = vmul.bf16 %v1326, %v374
        %v1383 = vmul.bf16 %v1337, %v375
        %v1384 = vmul.bf16 %v1348, %v376
        %v1385 = vmul.bf16 %v1359, %v377
        %v1386 = vmul.bf16 %v1370, %v378
        %1387 = vset.pattern.permute.xlu0 5
        %1388 = vperm.xlu0 %1387, %v379
        %v1389 = vpop.permute.xlu0 %1388
        %v1392 = vunpack.c.l.s4 839922192
        %v1393 = vunpack.c.0.s8 %v1392
        %v1394 = vlaneseq
        %v1395 = vshrl.u32 %v1394, 7
        %v1396 = vsub.s32 %v1393, %v1395
        %v1397 = vrot.slane %v1389, %v1396
        %1398 = vset.pattern.permute.xlu0 5
        %1399 = vperm.xlu0 %1398, %v380
        %v1400 = vpop.permute.xlu0 %1399
        %v1403 = vunpack.c.l.s4 839922192
        %v1404 = vunpack.c.0.s8 %v1403
        %v1405 = vlaneseq
        %v1406 = vshrl.u32 %v1405, 7
        %v1407 = vsub.s32 %v1404, %v1406
        %v1408 = vrot.slane %v1400, %v1407
        %1409 = vset.pattern.permute.xlu0 5
        %1410 = vperm.xlu0 %1409, %v381
        %v1411 = vpop.permute.xlu0 %1410
        %v1414 = vunpack.c.l.s4 839922192
        %v1415 = vunpack.c.0.s8 %v1414
        %v1416 = vlaneseq
        %v1417 = vshrl.u32 %v1416, 7
        %v1418 = vsub.s32 %v1415, %v1417
        %v1419 = vrot.slane %v1411, %v1418
        %1420 = vset.pattern.permute.xlu0 5
        %1421 = vperm.xlu0 %1420, %v382
        %v1422 = vpop.permute.xlu0 %1421
        %v1425 = vunpack.c.l.s4 839922192
        %v1426 = vunpack.c.0.s8 %v1425
        %v1427 = vlaneseq
        %v1428 = vshrl.u32 %v1427, 7
        %v1429 = vsub.s32 %v1426, %v1428
        %v1430 = vrot.slane %v1422, %v1429
        %1431 = vset.pattern.permute.xlu0 5
        %1432 = vperm.xlu0 %1431, %v383
        %v1433 = vpop.permute.xlu0 %1432
        %v1436 = vunpack.c.l.s4 839922192
        %v1437 = vunpack.c.0.s8 %v1436
        %v1438 = vlaneseq
        %v1439 = vshrl.u32 %v1438, 7
        %v1440 = vsub.s32 %v1437, %v1439
        %v1441 = vrot.slane %v1433, %v1440
        %1442 = vset.pattern.permute.xlu0 5
        %1443 = vperm.xlu0 %1442, %v384
        %v1444 = vpop.permute.xlu0 %1443
        %v1447 = vunpack.c.l.s4 839922192
        %v1448 = vunpack.c.0.s8 %v1447
        %v1449 = vlaneseq
        %v1450 = vshrl.u32 %v1449, 7
        %v1451 = vsub.s32 %v1448, %v1450
        %v1452 = vrot.slane %v1444, %v1451
        %1453 = vset.pattern.permute.xlu0 5
        %1454 = vperm.xlu0 %1453, %v385
        %v1455 = vpop.permute.xlu0 %1454
        %v1458 = vunpack.c.l.s4 839922192
        %v1459 = vunpack.c.0.s8 %v1458
        %v1460 = vlaneseq
        %v1461 = vshrl.u32 %v1460, 7
        %v1462 = vsub.s32 %v1459, %v1461
        %v1463 = vrot.slane %v1455, %v1462
        %1464 = vset.pattern.permute.xlu0 5
        %1465 = vperm.xlu0 %1464, %v386
        %v1466 = vpop.permute.xlu0 %1465
        %v1469 = vunpack.c.l.s4 839922192
        %v1470 = vunpack.c.0.s8 %v1469
        %v1471 = vlaneseq
        %v1472 = vshrl.u32 %v1471, 7
        %v1473 = vsub.s32 %v1470, %v1472
        %v1474 = vrot.slane %v1466, %v1473
        %1475 = vset.pattern.permute.xlu0 5
        %1476 = vperm.xlu0 %1475, %v387
        %v1477 = vpop.permute.xlu0 %1476
        %v1480 = vunpack.c.l.s4 839922192
        %v1481 = vunpack.c.0.s8 %v1480
        %v1482 = vlaneseq
        %v1483 = vshrl.u32 %v1482, 7
        %v1484 = vsub.s32 %v1481, %v1483
        %v1485 = vrot.slane %v1477, %v1484
        %1486 = vset.pattern.permute.xlu0 5
        %1487 = vperm.xlu0 %1486, %v388
        %v1488 = vpop.permute.xlu0 %1487
        %v1491 = vunpack.c.l.s4 839922192
        %v1492 = vunpack.c.0.s8 %v1491
        %v1493 = vlaneseq
        %v1494 = vshrl.u32 %v1493, 7
        %v1495 = vsub.s32 %v1492, %v1494
        %v1496 = vrot.slane %v1488, %v1495
        %1497 = vset.pattern.permute.xlu0 5
        %1498 = vperm.xlu0 %1497, %v389
        %v1499 = vpop.permute.xlu0 %1498
        %v1502 = vunpack.c.l.s4 839922192
        %v1503 = vunpack.c.0.s8 %v1502
        %v1504 = vlaneseq
        %v1505 = vshrl.u32 %v1504, 7
        %v1506 = vsub.s32 %v1503, %v1505
        %v1507 = vrot.slane %v1499, %v1506
        %1508 = vset.pattern.permute.xlu0 5
        %1509 = vperm.xlu0 %1508, %v390
        %v1510 = vpop.permute.xlu0 %1509
        %v1513 = vunpack.c.l.s4 839922192
        %v1514 = vunpack.c.0.s8 %v1513
        %v1515 = vlaneseq
        %v1516 = vshrl.u32 %v1515, 7
        %v1517 = vsub.s32 %v1514, %v1516
        %v1518 = vrot.slane %v1510, %v1517
        %1519 = vset.pattern.permute.xlu0 5
        %1520 = vperm.xlu0 %1519, %v391
        %v1521 = vpop.permute.xlu0 %1520
        %v1524 = vunpack.c.l.s4 839922192
        %v1525 = vunpack.c.0.s8 %v1524
        %v1526 = vlaneseq
        %v1527 = vshrl.u32 %v1526, 7
        %v1528 = vsub.s32 %v1525, %v1527
        %v1529 = vrot.slane %v1521, %v1528
        %1530 = vset.pattern.permute.xlu0 5
        %1531 = vperm.xlu0 %1530, %v392
        %v1532 = vpop.permute.xlu0 %1531
        %v1535 = vunpack.c.l.s4 839922192
        %v1536 = vunpack.c.0.s8 %v1535
        %v1537 = vlaneseq
        %v1538 = vshrl.u32 %v1537, 7
        %v1539 = vsub.s32 %v1536, %v1538
        %v1540 = vrot.slane %v1532, %v1539
        %1541 = vset.pattern.permute.xlu0 5
        %1542 = vperm.xlu0 %1541, %v393
        %v1543 = vpop.permute.xlu0 %1542
        %v1546 = vunpack.c.l.s4 839922192
        %v1547 = vunpack.c.0.s8 %v1546
        %v1548 = vlaneseq
        %v1549 = vshrl.u32 %v1548, 7
        %v1550 = vsub.s32 %v1547, %v1549
        %v1551 = vrot.slane %v1543, %v1550
        %1552 = vset.pattern.permute.xlu0 5
        %1553 = vperm.xlu0 %1552, %v394
        %v1554 = vpop.permute.xlu0 %1553
        %v1557 = vunpack.c.l.s4 839922192
        %v1558 = vunpack.c.0.s8 %v1557
        %v1559 = vlaneseq
        %v1560 = vshrl.u32 %v1559, 7
        %v1561 = vsub.s32 %v1558, %v1560
        %v1562 = vrot.slane %v1554, %v1561
        %v1563 = vmul.bf16 %v1397, %v363
        %v1564 = vmul.bf16 %v1408, %v364
        %v1565 = vmul.bf16 %v1419, %v365
        %v1566 = vmul.bf16 %v1430, %v366
        %v1567 = vmul.bf16 %v1441, %v367
        %v1568 = vmul.bf16 %v1452, %v368
        %v1569 = vmul.bf16 %v1463, %v369
        %v1570 = vmul.bf16 %v1474, %v370
        %v1571 = vmul.bf16 %v1485, %v371
        %v1572 = vmul.bf16 %v1496, %v372
        %v1573 = vmul.bf16 %v1507, %v373
        %v1574 = vmul.bf16 %v1518, %v374
        %v1575 = vmul.bf16 %v1529, %v375
        %v1576 = vmul.bf16 %v1540, %v376
        %v1577 = vmul.bf16 %v1551, %v377
        %v1578 = vmul.bf16 %v1562, %v378
        %v1595 = vunpack.c.l.b16 %v363
        %v1596 = vunpack.c.l.b16 %v364
        %v1597 = vunpack.c.l.b16 %v365
        %v1598 = vunpack.c.l.b16 %v366
        %v1599 = vunpack.c.l.b16 %v367
        %v1600 = vunpack.c.l.b16 %v368
        %v1601 = vunpack.c.l.b16 %v369
        %v1602 = vunpack.c.l.b16 %v370
        %v1603 = vunpack.c.l.b16 %v371
        %v1604 = vunpack.c.l.b16 %v372
        %v1605 = vunpack.c.l.b16 %v373
        %v1606 = vunpack.c.l.b16 %v374
        %v1607 = vunpack.c.l.b16 %v375
        %v1608 = vunpack.c.l.b16 %v376
        %v1609 = vunpack.c.l.b16 %v377
        %v1610 = vunpack.c.l.b16 %v378
        %v1611 = vpack.c.b16 %v1596, %v1595
        %v1612 = vpack.c.b16 %v1598, %v1597
        %v1613 = vpack.c.b16 %v1600, %v1599
        %v1614 = vpack.c.b16 %v1602, %v1601
        %v1615 = vpack.c.b16 %v1604, %v1603
        %v1616 = vpack.c.b16 %v1606, %v1605
        %v1617 = vpack.c.b16 %v1608, %v1607
        %v1618 = vpack.c.b16 %v1610, %v1609
        %v1643 = vunpack.c.l.b16 %v603
        %v1644 = vunpack.c.l.b16 %v604
        %v1645 = vunpack.c.l.b16 %v605
        %v1646 = vunpack.c.l.b16 %v606
        %v1647 = vunpack.c.l.b16 %v607
        %v1648 = vunpack.c.l.b16 %v608
        %v1649 = vunpack.c.l.b16 %v609
        %v1650 = vunpack.c.l.b16 %v610
        %v1651 = vunpack.c.l.b16 %v611
        %v1652 = vunpack.c.l.b16 %v612
        %v1653 = vunpack.c.l.b16 %v613
        %v1654 = vunpack.c.l.b16 %v614
        %v1655 = vunpack.c.l.b16 %v615
        %v1656 = vunpack.c.l.b16 %v616
        %v1657 = vunpack.c.l.b16 %v617
        %v1658 = vunpack.c.l.b16 %v618
        %v1659 = vpack.c.b16 %v1644, %v1643
        %v1660 = vpack.c.b16 %v1646, %v1645
        %v1661 = vpack.c.b16 %v1648, %v1647
        %v1662 = vpack.c.b16 %v1650, %v1649
        %v1663 = vpack.c.b16 %v1652, %v1651
        %v1664 = vpack.c.b16 %v1654, %v1653
        %v1665 = vpack.c.b16 %v1656, %v1655
        %v1666 = vpack.c.b16 %v1658, %v1657
        %v1691 = vunpack.c.l.b16 %v795
        %v1692 = vunpack.c.l.b16 %v796
        %v1693 = vunpack.c.l.b16 %v797
        %v1694 = vunpack.c.l.b16 %v798
        %v1695 = vunpack.c.l.b16 %v799
        %v1696 = vunpack.c.l.b16 %v800
        %v1697 = vunpack.c.l.b16 %v801
        %v1698 = vunpack.c.l.b16 %v802
        %v1699 = vunpack.c.l.b16 %v803
        %v1700 = vunpack.c.l.b16 %v804
        %v1701 = vunpack.c.l.b16 %v805
        %v1702 = vunpack.c.l.b16 %v806
        %v1703 = vunpack.c.l.b16 %v807
        %v1704 = vunpack.c.l.b16 %v808
        %v1705 = vunpack.c.l.b16 %v809
        %v1706 = vunpack.c.l.b16 %v810
        %v1707 = vpack.c.b16 %v1692, %v1691
        %v1708 = vpack.c.b16 %v1694, %v1693
        %v1709 = vpack.c.b16 %v1696, %v1695
        %v1710 = vpack.c.b16 %v1698, %v1697
        %v1711 = vpack.c.b16 %v1700, %v1699
        %v1712 = vpack.c.b16 %v1702, %v1701
        %v1713 = vpack.c.b16 %v1704, %v1703
        %v1714 = vpack.c.b16 %v1706, %v1705
        %v1739 = vunpack.c.l.b16 %v987
        %v1740 = vunpack.c.l.b16 %v988
        %v1741 = vunpack.c.l.b16 %v989
        %v1742 = vunpack.c.l.b16 %v990
        %v1743 = vunpack.c.l.b16 %v991
        %v1744 = vunpack.c.l.b16 %v992
        %v1745 = vunpack.c.l.b16 %v993
        %v1746 = vunpack.c.l.b16 %v994
        %v1747 = vunpack.c.l.b16 %v995
        %v1748 = vunpack.c.l.b16 %v996
        %v1749 = vunpack.c.l.b16 %v997
        %v1750 = vunpack.c.l.b16 %v998
        %v1751 = vunpack.c.l.b16 %v999
        %v1752 = vunpack.c.l.b16 %v1000
        %v1753 = vunpack.c.l.b16 %v1001
        %v1754 = vunpack.c.l.b16 %v1002
        %v1755 = vpack.c.b16 %v1740, %v1739
        %v1756 = vpack.c.b16 %v1742, %v1741
        %v1757 = vpack.c.b16 %v1744, %v1743
        %v1758 = vpack.c.b16 %v1746, %v1745
        %v1759 = vpack.c.b16 %v1748, %v1747
        %v1760 = vpack.c.b16 %v1750, %v1749
        %v1761 = vpack.c.b16 %v1752, %v1751
        %v1762 = vpack.c.b16 %v1754, %v1753
        %v1787 = vunpack.c.l.b16 %v1179
        %v1788 = vunpack.c.l.b16 %v1180
        %v1789 = vunpack.c.l.b16 %v1181
        %v1790 = vunpack.c.l.b16 %v1182
        %v1791 = vunpack.c.l.b16 %v1183
        %v1792 = vunpack.c.l.b16 %v1184
        %v1793 = vunpack.c.l.b16 %v1185
        %v1794 = vunpack.c.l.b16 %v1186
        %v1795 = vunpack.c.l.b16 %v1187
        %v1796 = vunpack.c.l.b16 %v1188
        %v1797 = vunpack.c.l.b16 %v1189
        %v1798 = vunpack.c.l.b16 %v1190
        %v1799 = vunpack.c.l.b16 %v1191
        %v1800 = vunpack.c.l.b16 %v1192
        %v1801 = vunpack.c.l.b16 %v1193
        %v1802 = vunpack.c.l.b16 %v1194
        %v1803 = vpack.c.b16 %v1788, %v1787
        %v1804 = vpack.c.b16 %v1790, %v1789
        %v1805 = vpack.c.b16 %v1792, %v1791
        %v1806 = vpack.c.b16 %v1794, %v1793
        %v1807 = vpack.c.b16 %v1796, %v1795
        %v1808 = vpack.c.b16 %v1798, %v1797
        %v1809 = vpack.c.b16 %v1800, %v1799
        %v1810 = vpack.c.b16 %v1802, %v1801
        %v1835 = vunpack.c.l.b16 %v1371
        %v1836 = vunpack.c.l.b16 %v1372
        %v1837 = vunpack.c.l.b16 %v1373
        %v1838 = vunpack.c.l.b16 %v1374
        %v1839 = vunpack.c.l.b16 %v1375
        %v1840 = vunpack.c.l.b16 %v1376
        %v1841 = vunpack.c.l.b16 %v1377
        %v1842 = vunpack.c.l.b16 %v1378
        %v1843 = vunpack.c.l.b16 %v1379
        %v1844 = vunpack.c.l.b16 %v1380
        %v1845 = vunpack.c.l.b16 %v1381
        %v1846 = vunpack.c.l.b16 %v1382
        %v1847 = vunpack.c.l.b16 %v1383
        %v1848 = vunpack.c.l.b16 %v1384
        %v1849 = vunpack.c.l.b16 %v1385
        %v1850 = vunpack.c.l.b16 %v1386
        %v1851 = vpack.c.b16 %v1836, %v1835
        %v1852 = vpack.c.b16 %v1838, %v1837
        %v1853 = vpack.c.b16 %v1840, %v1839
        %v1854 = vpack.c.b16 %v1842, %v1841
        %v1855 = vpack.c.b16 %v1844, %v1843
        %v1856 = vpack.c.b16 %v1846, %v1845
        %v1857 = vpack.c.b16 %v1848, %v1847
        %v1858 = vpack.c.b16 %v1850, %v1849
        %v1883 = vunpack.c.l.b16 %v1563
        %v1884 = vunpack.c.l.b16 %v1564
        %v1885 = vunpack.c.l.b16 %v1565
        %v1886 = vunpack.c.l.b16 %v1566
        %v1887 = vunpack.c.l.b16 %v1567
        %v1888 = vunpack.c.l.b16 %v1568
        %v1889 = vunpack.c.l.b16 %v1569
        %v1890 = vunpack.c.l.b16 %v1570
        %v1891 = vunpack.c.l.b16 %v1571
        %v1892 = vunpack.c.l.b16 %v1572
        %v1893 = vunpack.c.l.b16 %v1573
        %v1894 = vunpack.c.l.b16 %v1574
        %v1895 = vunpack.c.l.b16 %v1575
        %v1896 = vunpack.c.l.b16 %v1576
        %v1897 = vunpack.c.l.b16 %v1577
        %v1898 = vunpack.c.l.b16 %v1578
        %v1899 = vpack.c.b16 %v1884, %v1883
        %v1900 = vpack.c.b16 %v1886, %v1885
        %v1901 = vpack.c.b16 %v1888, %v1887
        %v1902 = vpack.c.b16 %v1890, %v1889
        %v1903 = vpack.c.b16 %v1892, %v1891
        %v1904 = vpack.c.b16 %v1894, %v1893
        %v1905 = vpack.c.b16 %v1896, %v1895
        %v1906 = vpack.c.b16 %v1898, %v1897
        %v1915 = vld [vmem:[#allocation5] sm:$0xf]
        %v1916 = vld [vmem:[#allocation5 + $0x4] sm:$0xf]
        %v1917 = vld [vmem:[#allocation5 + $0x8] sm:$0xf]
        %v1918 = vld [vmem:[#allocation5 + $0xc] sm:$0xf]
        %v1919 = vld [vmem:[#allocation5 + $0x10] sm:$0xf]
        %v1920 = vld [vmem:[#allocation5 + $0x14] sm:$0xf]
        %v1921 = vld [vmem:[#allocation5 + $0x18] sm:$0xf]
        %v1922 = vld [vmem:[#allocation5 + $0x1c] sm:$0xf]
        %v1923 = vld [vmem:[#allocation5 + $0x20] sm:$0xf]
        %v1924 = vld [vmem:[#allocation5 + $0x24] sm:$0xf]
        %v1925 = vld [vmem:[#allocation5 + $0x28] sm:$0xf]
        %v1926 = vld [vmem:[#allocation5 + $0x2c] sm:$0xf]
        %v1927 = vld [vmem:[#allocation5 + $0x30] sm:$0xf]
        %v1928 = vld [vmem:[#allocation5 + $0x34] sm:$0xf]
        %v1929 = vld [vmem:[#allocation5 + $0x38] sm:$0xf]
        %v1930 = vld [vmem:[#allocation5 + $0x3c] sm:$0xf]
        %v1931 = vld [vmem:[#allocation5 + $0x40] sm:$0xf]
        %v1932 = vld [vmem:[#allocation5 + $0x44] sm:$0xf]
        %v1933 = vld [vmem:[#allocation5 + $0x48] sm:$0xf]
        %v1934 = vld [vmem:[#allocation5 + $0x4c] sm:$0xf]
        %v1935 = vld [vmem:[#allocation5 + $0x50] sm:$0xf]
        %v1936 = vld [vmem:[#allocation5 + $0x54] sm:$0xf]
        %v1937 = vld [vmem:[#allocation5 + $0x58] sm:$0xf]
        %v1938 = vld [vmem:[#allocation5 + $0x5c] sm:$0xf]
        %v1939 = vld [vmem:[#allocation5 + $0x60] sm:$0xf]
        %v1940 = vld [vmem:[#allocation5 + $0x64] sm:$0xf]
        %v1941 = vld [vmem:[#allocation5 + $0x68] sm:$0xf]
        %v1942 = vld [vmem:[#allocation5 + $0x6c] sm:$0xf]
        %v1943 = vld [vmem:[#allocation5 + $0x70] sm:$0xf]
        %v1944 = vld [vmem:[#allocation5 + $0x74] sm:$0xf]
        %v1945 = vld [vmem:[#allocation5 + $0x78] sm:$0xf]
        %v1946 = vld [vmem:[#allocation5 + $0x7c] sm:$0xf]
        %v1947 = vld [vmem:[#allocation5 + $0x80] sm:$0xf]
        %v1948 = vld [vmem:[#allocation5 + $0x84] sm:$0xf]
        %v1949 = vld [vmem:[#allocation5 + $0x88] sm:$0xf]
        %v1950 = vld [vmem:[#allocation5 + $0x8c] sm:$0xf]
        %v1951 = vld [vmem:[#allocation5 + $0x90] sm:$0xf]
        %v1952 = vld [vmem:[#allocation5 + $0x94] sm:$0xf]
        %v1953 = vld [vmem:[#allocation5 + $0x98] sm:$0xf]
        %v1954 = vld [vmem:[#allocation5 + $0x9c] sm:$0xf]
        %v1955 = vld [vmem:[#allocation5 + $0xa0] sm:$0xf]
        %v1956 = vld [vmem:[#allocation5 + $0xa4] sm:$0xf]
        %v1957 = vld [vmem:[#allocation5 + $0xa8] sm:$0xf]
        %v1958 = vld [vmem:[#allocation5 + $0xac] sm:$0xf]
        %v1959 = vld [vmem:[#allocation5 + $0xb0] sm:$0xf]
        %v1960 = vld [vmem:[#allocation5 + $0xb4] sm:$0xf]
        %v1961 = vld [vmem:[#allocation5 + $0xb8] sm:$0xf]
        %v1962 = vld [vmem:[#allocation5 + $0xbc] sm:$0xf]
        %v1963 = vld [vmem:[#allocation5 + $0xc0] sm:$0xf]
        %v1964 = vld [vmem:[#allocation5 + $0xc4] sm:$0xf]
        %v1965 = vld [vmem:[#allocation5 + $0xc8] sm:$0xf]
        %v1966 = vld [vmem:[#allocation5 + $0xcc] sm:$0xf]
        %v1967 = vld [vmem:[#allocation5 + $0xd0] sm:$0xf]
        %v1968 = vld [vmem:[#allocation5 + $0xd4] sm:$0xf]
        %v1969 = vld [vmem:[#allocation5 + $0xd8] sm:$0xf]
        %v1970 = vld [vmem:[#allocation5 + $0xdc] sm:$0xf]
        %v1971 = vld [vmem:[#allocation5 + $0xe0] sm:$0xf]
        %v1972 = vld [vmem:[#allocation5 + $0xe4] sm:$0xf]
        %v1973 = vld [vmem:[#allocation5 + $0xe8] sm:$0xf]
        %v1974 = vld [vmem:[#allocation5 + $0xec] sm:$0xf]
        %v1975 = vld [vmem:[#allocation5 + $0xf0] sm:$0xf]
        %v1976 = vld [vmem:[#allocation5 + $0xf4] sm:$0xf]
        %v1977 = vld [vmem:[#allocation5 + $0xf8] sm:$0xf]
        %v1978 = vld [vmem:[#allocation5 + $0xfc] sm:$0xf]
        %v1979 = vld [vmem:[#allocation5 + $0x100] sm:$0xf]
        %v1980 = vld [vmem:[#allocation5 + $0x104] sm:$0xf]
        %v1981 = vld [vmem:[#allocation5 + $0x108] sm:$0xf]
        %v1982 = vld [vmem:[#allocation5 + $0x10c] sm:$0xf]
        %v1983 = vld [vmem:[#allocation5 + $0x110] sm:$0xf]
        %v1984 = vld [vmem:[#allocation5 + $0x114] sm:$0xf]
        %v1985 = vld [vmem:[#allocation5 + $0x118] sm:$0xf]
        %v1986 = vld [vmem:[#allocation5 + $0x11c] sm:$0xf]
        %v1987 = vld [vmem:[#allocation5 + $0x120] sm:$0xf]
        %v1988 = vld [vmem:[#allocation5 + $0x124] sm:$0xf]
        %v1989 = vld [vmem:[#allocation5 + $0x128] sm:$0xf]
        %v1990 = vld [vmem:[#allocation5 + $0x12c] sm:$0xf]
        %v1991 = vld [vmem:[#allocation5 + $0x130] sm:$0xf]
        %v1992 = vld [vmem:[#allocation5 + $0x134] sm:$0xf]
        %v1993 = vld [vmem:[#allocation5 + $0x138] sm:$0xf]
        %v1994 = vld [vmem:[#allocation5 + $0x13c] sm:$0xf]
        %v1995 = vld [vmem:[#allocation5 + $0x140] sm:$0xf]
        %v1996 = vld [vmem:[#allocation5 + $0x144] sm:$0xf]
        %v1997 = vld [vmem:[#allocation5 + $0x148] sm:$0xf]
        %v1998 = vld [vmem:[#allocation5 + $0x14c] sm:$0xf]
        %v1999 = vld [vmem:[#allocation5 + $0x150] sm:$0xf]
        %v2000 = vld [vmem:[#allocation5 + $0x154] sm:$0xf]
        %v2001 = vld [vmem:[#allocation5 + $0x158] sm:$0xf]
        %v2002 = vld [vmem:[#allocation5 + $0x15c] sm:$0xf]
        %v2003 = vld [vmem:[#allocation5 + $0x160] sm:$0xf]
        %v2004 = vld [vmem:[#allocation5 + $0x164] sm:$0xf]
        %v2005 = vld [vmem:[#allocation5 + $0x168] sm:$0xf]
        %v2006 = vld [vmem:[#allocation5 + $0x16c] sm:$0xf]
        %v2007 = vld [vmem:[#allocation5 + $0x170] sm:$0xf]
        %v2008 = vld [vmem:[#allocation5 + $0x174] sm:$0xf]
        %v2009 = vld [vmem:[#allocation5 + $0x178] sm:$0xf]
        %v2010 = vld [vmem:[#allocation5 + $0x17c] sm:$0xf]
        %v2011 = vld [vmem:[#allocation5 + $0x180] sm:$0xf]
        %v2012 = vld [vmem:[#allocation5 + $0x184] sm:$0xf]
        %v2013 = vld [vmem:[#allocation5 + $0x188] sm:$0xf]
        %v2014 = vld [vmem:[#allocation5 + $0x18c] sm:$0xf]
        %v2015 = vld [vmem:[#allocation5 + $0x190] sm:$0xf]
        %v2016 = vld [vmem:[#allocation5 + $0x194] sm:$0xf]
        %v2017 = vld [vmem:[#allocation5 + $0x198] sm:$0xf]
        %v2018 = vld [vmem:[#allocation5 + $0x19c] sm:$0xf]
        %v2019 = vld [vmem:[#allocation5 + $0x1a0] sm:$0xf]
        %v2020 = vld [vmem:[#allocation5 + $0x1a4] sm:$0xf]
        %v2021 = vld [vmem:[#allocation5 + $0x1a8] sm:$0xf]
        %v2022 = vld [vmem:[#allocation5 + $0x1ac] sm:$0xf]
        %v2023 = vld [vmem:[#allocation5 + $0x1b0] sm:$0xf]
        %v2024 = vld [vmem:[#allocation5 + $0x1b4] sm:$0xf]
        %v2025 = vld [vmem:[#allocation5 + $0x1b8] sm:$0xf]
        %v2026 = vld [vmem:[#allocation5 + $0x1bc] sm:$0xf]
        %v2139 = vunpack.c.l.b16 %v1915
        %v2140 = vunpack.c.l.b16 %v1916
        %v2141 = vunpack.c.l.b16 %v1917
        %v2142 = vunpack.c.l.b16 %v1918
        %v2143 = vunpack.c.l.b16 %v1919
        %v2144 = vunpack.c.l.b16 %v1920
        %v2145 = vunpack.c.l.b16 %v1921
        %v2146 = vunpack.c.l.b16 %v1922
        %v2147 = vunpack.c.l.b16 %v1923
        %v2148 = vunpack.c.l.b16 %v1924
        %v2149 = vunpack.c.l.b16 %v1925
        %v2150 = vunpack.c.l.b16 %v1926
        %v2151 = vunpack.c.l.b16 %v1927
        %v2152 = vunpack.c.l.b16 %v1928
        %v2153 = vunpack.c.l.b16 %v1929
        %v2154 = vunpack.c.l.b16 %v1930
        %v2155 = vunpack.c.l.b16 %v1931
        %v2156 = vunpack.c.l.b16 %v1932
        %v2157 = vunpack.c.l.b16 %v1933
        %v2158 = vunpack.c.l.b16 %v1934
        %v2159 = vunpack.c.l.b16 %v1935
        %v2160 = vunpack.c.l.b16 %v1936
        %v2161 = vunpack.c.l.b16 %v1937
        %v2162 = vunpack.c.l.b16 %v1938
        %v2163 = vunpack.c.l.b16 %v1939
        %v2164 = vunpack.c.l.b16 %v1940
        %v2165 = vunpack.c.l.b16 %v1941
        %v2166 = vunpack.c.l.b16 %v1942
        %v2167 = vunpack.c.l.b16 %v1943
        %v2168 = vunpack.c.l.b16 %v1944
        %v2169 = vunpack.c.l.b16 %v1945
        %v2170 = vunpack.c.l.b16 %v1946
        %v2171 = vunpack.c.l.b16 %v1947
        %v2172 = vunpack.c.l.b16 %v1948
        %v2173 = vunpack.c.l.b16 %v1949
        %v2174 = vunpack.c.l.b16 %v1950
        %v2175 = vunpack.c.l.b16 %v1951
        %v2176 = vunpack.c.l.b16 %v1952
        %v2177 = vunpack.c.l.b16 %v1953
        %v2178 = vunpack.c.l.b16 %v1954
        %v2179 = vunpack.c.l.b16 %v1955
        %v2180 = vunpack.c.l.b16 %v1956
        %v2181 = vunpack.c.l.b16 %v1957
        %v2182 = vunpack.c.l.b16 %v1958
        %v2183 = vunpack.c.l.b16 %v1959
        %v2184 = vunpack.c.l.b16 %v1960
        %v2185 = vunpack.c.l.b16 %v1961
        %v2186 = vunpack.c.l.b16 %v1962
        %v2187 = vunpack.c.l.b16 %v1963
        %v2188 = vunpack.c.l.b16 %v1964
        %v2189 = vunpack.c.l.b16 %v1965
        %v2190 = vunpack.c.l.b16 %v1966
        %v2191 = vunpack.c.l.b16 %v1967
        %v2192 = vunpack.c.l.b16 %v1968
        %v2193 = vunpack.c.l.b16 %v1969
        %v2194 = vunpack.c.l.b16 %v1970
        %v2195 = vunpack.c.l.b16 %v1971
        %v2196 = vunpack.c.l.b16 %v1972
        %v2197 = vunpack.c.l.b16 %v1973
        %v2198 = vunpack.c.l.b16 %v1974
        %v2199 = vunpack.c.l.b16 %v1975
        %v2200 = vunpack.c.l.b16 %v1976
        %v2201 = vunpack.c.l.b16 %v1977
        %v2202 = vunpack.c.l.b16 %v1978
        %v2203 = vunpack.c.l.b16 %v1979
        %v2204 = vunpack.c.l.b16 %v1980
        %v2205 = vunpack.c.l.b16 %v1981
        %v2206 = vunpack.c.l.b16 %v1982
        %v2207 = vunpack.c.l.b16 %v1983
        %v2208 = vunpack.c.l.b16 %v1984
        %v2209 = vunpack.c.l.b16 %v1985
        %v2210 = vunpack.c.l.b16 %v1986
        %v2211 = vunpack.c.l.b16 %v1987
        %v2212 = vunpack.c.l.b16 %v1988
        %v2213 = vunpack.c.l.b16 %v1989
        %v2214 = vunpack.c.l.b16 %v1990
        %v2215 = vunpack.c.l.b16 %v1991
        %v2216 = vunpack.c.l.b16 %v1992
        %v2217 = vunpack.c.l.b16 %v1993
        %v2218 = vunpack.c.l.b16 %v1994
        %v2219 = vunpack.c.l.b16 %v1995
        %v2220 = vunpack.c.l.b16 %v1996
        %v2221 = vunpack.c.l.b16 %v1997
        %v2222 = vunpack.c.l.b16 %v1998
        %v2223 = vunpack.c.l.b16 %v1999
        %v2224 = vunpack.c.l.b16 %v2000
        %v2225 = vunpack.c.l.b16 %v2001
        %v2226 = vunpack.c.l.b16 %v2002
        %v2227 = vunpack.c.l.b16 %v2003
        %v2228 = vunpack.c.l.b16 %v2004
        %v2229 = vunpack.c.l.b16 %v2005
        %v2230 = vunpack.c.l.b16 %v2006
        %v2231 = vunpack.c.l.b16 %v2007
        %v2232 = vunpack.c.l.b16 %v2008
        %v2233 = vunpack.c.l.b16 %v2009
        %v2234 = vunpack.c.l.b16 %v2010
        %v2235 = vunpack.c.l.b16 %v2011
        %v2236 = vunpack.c.l.b16 %v2012
        %v2237 = vunpack.c.l.b16 %v2013
        %v2238 = vunpack.c.l.b16 %v2014
        %v2239 = vunpack.c.l.b16 %v2015
        %v2240 = vunpack.c.l.b16 %v2016
        %v2241 = vunpack.c.l.b16 %v2017
        %v2242 = vunpack.c.l.b16 %v2018
        %v2243 = vunpack.c.l.b16 %v2019
        %v2244 = vunpack.c.l.b16 %v2020
        %v2245 = vunpack.c.l.b16 %v2021
        %v2246 = vunpack.c.l.b16 %v2022
        %v2247 = vunpack.c.l.b16 %v2023
        %v2248 = vunpack.c.l.b16 %v2024
        %v2249 = vunpack.c.l.b16 %v2025
        %v2250 = vunpack.c.l.b16 %v2026
        %v2251 = vpack.c.b16 %v2140, %v2139
        %v2252 = vpack.c.b16 %v2142, %v2141
        %v2253 = vpack.c.b16 %v2144, %v2143
        %v2254 = vpack.c.b16 %v2146, %v2145
        %v2255 = vpack.c.b16 %v2148, %v2147
        %v2256 = vpack.c.b16 %v2150, %v2149
        %v2257 = vpack.c.b16 %v2152, %v2151
        %v2258 = vpack.c.b16 %v2154, %v2153
        %v2259 = vpack.c.b16 %v2156, %v2155
        %v2260 = vpack.c.b16 %v2158, %v2157
        %v2261 = vpack.c.b16 %v2160, %v2159
        %v2262 = vpack.c.b16 %v2162, %v2161
        %v2263 = vpack.c.b16 %v2164, %v2163
        %v2264 = vpack.c.b16 %v2166, %v2165
        %v2265 = vpack.c.b16 %v2168, %v2167
        %v2266 = vpack.c.b16 %v2170, %v2169
        %v2267 = vpack.c.b16 %v2172, %v2171
        %v2268 = vpack.c.b16 %v2174, %v2173
        %v2269 = vpack.c.b16 %v2176, %v2175
        %v2270 = vpack.c.b16 %v2178, %v2177
        %v2271 = vpack.c.b16 %v2180, %v2179
        %v2272 = vpack.c.b16 %v2182, %v2181
        %v2273 = vpack.c.b16 %v2184, %v2183
        %v2274 = vpack.c.b16 %v2186, %v2185
        %v2275 = vpack.c.b16 %v2188, %v2187
        %v2276 = vpack.c.b16 %v2190, %v2189
        %v2277 = vpack.c.b16 %v2192, %v2191
        %v2278 = vpack.c.b16 %v2194, %v2193
        %v2279 = vpack.c.b16 %v2196, %v2195
        %v2280 = vpack.c.b16 %v2198, %v2197
        %v2281 = vpack.c.b16 %v2200, %v2199
        %v2282 = vpack.c.b16 %v2202, %v2201
        %v2283 = vpack.c.b16 %v2204, %v2203
        %v2284 = vpack.c.b16 %v2206, %v2205
        %v2285 = vpack.c.b16 %v2208, %v2207
        %v2286 = vpack.c.b16 %v2210, %v2209
        %v2287 = vpack.c.b16 %v2212, %v2211
        %v2288 = vpack.c.b16 %v2214, %v2213
        %v2289 = vpack.c.b16 %v2216, %v2215
        %v2290 = vpack.c.b16 %v2218, %v2217
        %v2291 = vpack.c.b16 %v2220, %v2219
        %v2292 = vpack.c.b16 %v2222, %v2221
        %v2293 = vpack.c.b16 %v2224, %v2223
        %v2294 = vpack.c.b16 %v2226, %v2225
        %v2295 = vpack.c.b16 %v2228, %v2227
        %v2296 = vpack.c.b16 %v2230, %v2229
        %v2297 = vpack.c.b16 %v2232, %v2231
        %v2298 = vpack.c.b16 %v2234, %v2233
        %v2299 = vpack.c.b16 %v2236, %v2235
        %v2300 = vpack.c.b16 %v2238, %v2237
        %v2301 = vpack.c.b16 %v2240, %v2239
        %v2302 = vpack.c.b16 %v2242, %v2241
        %v2303 = vpack.c.b16 %v2244, %v2243
        %v2304 = vpack.c.b16 %v2246, %v2245
        %v2305 = vpack.c.b16 %v2248, %v2247
        %v2306 = vpack.c.b16 %v2250, %v2249
        %2363 = vmatprep.subr.bf16.mxu0 0
        %2364 = vmatpush1.bf16.msra.mxu0 %v2258
        %2365 = vmatprep.subr.bf16.mxu0 0
        %2366 = vmatpush1.bf16.msra.mxu0 %v2257
        %2367 = vmatprep.subr.bf16.mxu0 0
        %2368 = vmatpush1.bf16.msra.mxu0 %v2256
        %2369 = vmatprep.subr.bf16.mxu0 0
        %2370 = vmatpush1.bf16.msra.mxu0 %v2255
        %2371 = vmatprep.subr.bf16.mxu0 0
        %2372 = vmatpush1.bf16.msra.mxu0 %v2254
        %2373 = vmatprep.subr.bf16.mxu0 0
        %2374 = vmatpush1.bf16.msra.mxu0 %v2253
        %2375 = vmatprep.subr.bf16.mxu0 0
        %2376 = vmatpush1.bf16.msra.mxu0 %v2252
        %2377 = vmatprep.subr.bf16.mxu0 0
        %2378 = vmatpush1.bf16.msra.mxu0 %v2251
        %2379 = vmatprep.subr.bf16.mxu0 0
        %2380 = vmatpush2.bf16.msra.mxu0 %v2266
        %2381 = vmatprep.subr.bf16.mxu0 0
        %2382 = vmatpush2.bf16.msra.mxu0 %v2265
        %2383 = vmatprep.subr.bf16.mxu0 0
        %2384 = vmatpush2.bf16.msra.mxu0 %v2264
        %2385 = vmatprep.subr.bf16.mxu0 0
        %2386 = vmatpush2.bf16.msra.mxu0 %v2263
        %2387 = vmatprep.subr.bf16.mxu0 0
        %2388 = vmatpush2.bf16.msra.mxu0 %v2262
        %2389 = vmatprep.subr.bf16.mxu0 0
        %2390 = vmatpush2.bf16.msra.mxu0 %v2261
        %2391 = vmatprep.subr.bf16.mxu0 0
        %2392 = vmatpush2.bf16.msra.mxu0 %v2260
        %2393 = vmatprep.subr.bf16.mxu0 0
        %2394 = vmatpush2.bf16.msra.mxu0 %v2259
        %2395 = vmatprep.mubr.bf16.mxu0 %v1659
        %2396 = vmatmul.mubr.bf16.gmra.mxu0 %v1611
        %v2397 = vpop.f32.mrf.mxu0
        %v2398 = vadd.f32 0.0, %v2397
        %v2399 = vpop.f32.mrf.mxu0
        %v2400 = vpop.f32.mrf.mxu0
        %v2401 = vadd.f32 0.0, %v2400
        %v2402 = vpop.f32.mrf.mxu0
        %2403 = vmatprep.mubr.bf16.mxu0 %v1660
        %2404 = vmatmul.mubr.bf16.gmra.mxu0 %v1612
        %v2405 = vpop.f32.mrf.mxu0
        %v2406 = vadd.f32 0.0, %v2405
        %v2407 = vpop.f32.mrf.mxu0
        %v2408 = vpop.f32.mrf.mxu0
        %v2409 = vadd.f32 0.0, %v2408
        %v2410 = vpop.f32.mrf.mxu0
        %2411 = vmatprep.mubr.bf16.mxu0 %v1661
        %2412 = vmatmul.mubr.bf16.gmra.mxu0 %v1613
        %v2413 = vpop.f32.mrf.mxu0
        %v2414 = vadd.f32 0.0, %v2413
        %v2415 = vpop.f32.mrf.mxu0
        %v2416 = vpop.f32.mrf.mxu0
        %v2417 = vadd.f32 0.0, %v2416
        %v2418 = vpop.f32.mrf.mxu0
        %2419 = vmatprep.mubr.bf16.mxu0 %v1662
        %2420 = vmatmul.mubr.bf16.gmra.mxu0 %v1614
        %v2421 = vpop.f32.mrf.mxu0
        %v2422 = vadd.f32 0.0, %v2421
        %v2423 = vpop.f32.mrf.mxu0
        %v2424 = vpop.f32.mrf.mxu0
        %v2425 = vadd.f32 0.0, %v2424
        %v2426 = vpop.f32.mrf.mxu0
        %2427 = vmatprep.mubr.bf16.mxu0 %v1663
        %2428 = vmatmul.mubr.bf16.gmra.mxu0 %v1615
        %v2429 = vpop.f32.mrf.mxu0
        %v2430 = vadd.f32 0.0, %v2429
        %v2431 = vpop.f32.mrf.mxu0
        %v2432 = vpop.f32.mrf.mxu0
        %v2433 = vadd.f32 0.0, %v2432
        %v2434 = vpop.f32.mrf.mxu0
        %2435 = vmatprep.mubr.bf16.mxu0 %v1664
        %2436 = vmatmul.mubr.bf16.gmra.mxu0 %v1616
        %v2437 = vpop.f32.mrf.mxu0
        %v2438 = vadd.f32 0.0, %v2437
        %v2439 = vpop.f32.mrf.mxu0
        %v2440 = vpop.f32.mrf.mxu0
        %v2441 = vadd.f32 0.0, %v2440
        %v2442 = vpop.f32.mrf.mxu0
        %2443 = vmatprep.mubr.bf16.mxu0 %v1665
        %2444 = vmatmul.mubr.bf16.gmra.mxu0 %v1617
        %v2445 = vpop.f32.mrf.mxu0
        %v2446 = vadd.f32 0.0, %v2445
        %v2447 = vpop.f32.mrf.mxu0
        %v2448 = vpop.f32.mrf.mxu0
        %v2449 = vadd.f32 0.0, %v2448
        %v2450 = vpop.f32.mrf.mxu0
        %2451 = vmatprep.mubr.bf16.mxu0 %v1666
        %2452 = vmatmul.mubr.bf16.gmra.mxu0 %v1618
        %v2453 = vpop.f32.mrf.mxu0
        %v2454 = vadd.f32 0.0, %v2453
        %v2455 = vpop.f32.mrf.mxu0
        %v2456 = vpop.f32.mrf.mxu0
        %v2457 = vadd.f32 0.0, %v2456
        %v2458 = vpop.f32.mrf.mxu0
        %2459 = vdwg.mxu0
        %2460 = vmatprep.subr.bf16.mxu0 0
        %2461 = vmatpush1.bf16.msra.mxu0 %v2274
        %2462 = vmatprep.subr.bf16.mxu0 0
        %2463 = vmatpush1.bf16.msra.mxu0 %v2273
        %2464 = vmatprep.subr.bf16.mxu0 0
        %2465 = vmatpush1.bf16.msra.mxu0 %v2272
        %2466 = vmatprep.subr.bf16.mxu0 0
        %2467 = vmatpush1.bf16.msra.mxu0 %v2271
        %2468 = vmatprep.subr.bf16.mxu0 0
        %2469 = vmatpush1.bf16.msra.mxu0 %v2270
        %2470 = vmatprep.subr.bf16.mxu0 0
        %2471 = vmatpush1.bf16.msra.mxu0 %v2269
        %2472 = vmatprep.subr.bf16.mxu0 0
        %2473 = vmatpush1.bf16.msra.mxu0 %v2268
        %2474 = vmatprep.subr.bf16.mxu0 0
        %2475 = vmatpush1.bf16.msra.mxu0 %v2267
        %2476 = vmatprep.subr.bf16.mxu0 0
        %2477 = vmatpush2.bf16.msra.mxu0 %v2282
        %2478 = vmatprep.subr.bf16.mxu0 0
        %2479 = vmatpush2.bf16.msra.mxu0 %v2281
        %2480 = vmatprep.subr.bf16.mxu0 0
        %2481 = vmatpush2.bf16.msra.mxu0 %v2280
        %2482 = vmatprep.subr.bf16.mxu0 0
        %2483 = vmatpush2.bf16.msra.mxu0 %v2279
        %2484 = vmatprep.subr.bf16.mxu0 0
        %2485 = vmatpush2.bf16.msra.mxu0 %v2278
        %2486 = vmatprep.subr.bf16.mxu0 0
        %2487 = vmatpush2.bf16.msra.mxu0 %v2277
        %2488 = vmatprep.subr.bf16.mxu0 0
        %2489 = vmatpush2.bf16.msra.mxu0 %v2276
        %2490 = vmatprep.subr.bf16.mxu0 0
        %2491 = vmatpush2.bf16.msra.mxu0 %v2275
        %2492 = vmatprep.mubr.bf16.mxu0 %v1755
        %2493 = vmatmul.mubr.bf16.gmra.mxu0 %v1707
        %v2494 = vpop.f32.mrf.mxu0
        %v2495 = vadd.f32 %v2398, %v2494
        %v2496 = vpop.f32.mrf.mxu0
        %v2497 = vpop.f32.mrf.mxu0
        %v2498 = vadd.f32 %v2401, %v2497
        %v2499 = vpop.f32.mrf.mxu0
        %2500 = vmatprep.mubr.bf16.mxu0 %v1756
        %2501 = vmatmul.mubr.bf16.gmra.mxu0 %v1708
        %v2502 = vpop.f32.mrf.mxu0
        %v2503 = vadd.f32 %v2406, %v2502
        %v2504 = vpop.f32.mrf.mxu0
        %v2505 = vpop.f32.mrf.mxu0
        %v2506 = vadd.f32 %v2409, %v2505
        %v2507 = vpop.f32.mrf.mxu0
        %2508 = vmatprep.mubr.bf16.mxu0 %v1757
        %2509 = vmatmul.mubr.bf16.gmra.mxu0 %v1709
        %v2510 = vpop.f32.mrf.mxu0
        %v2511 = vadd.f32 %v2414, %v2510
        %v2512 = vpop.f32.mrf.mxu0
        %v2513 = vpop.f32.mrf.mxu0
        %v2514 = vadd.f32 %v2417, %v2513
        %v2515 = vpop.f32.mrf.mxu0
        %2516 = vmatprep.mubr.bf16.mxu0 %v1758
        %2517 = vmatmul.mubr.bf16.gmra.mxu0 %v1710
        %v2518 = vpop.f32.mrf.mxu0
        %v2519 = vadd.f32 %v2422, %v2518
        %v2520 = vpop.f32.mrf.mxu0
        %v2521 = vpop.f32.mrf.mxu0
        %v2522 = vadd.f32 %v2425, %v2521
        %v2523 = vpop.f32.mrf.mxu0
        %2524 = vmatprep.mubr.bf16.mxu0 %v1759
        %2525 = vmatmul.mubr.bf16.gmra.mxu0 %v1711
        %v2526 = vpop.f32.mrf.mxu0
        %v2527 = vadd.f32 %v2430, %v2526
        %v2528 = vpop.f32.mrf.mxu0
        %v2529 = vpop.f32.mrf.mxu0
        %v2530 = vadd.f32 %v2433, %v2529
        %v2531 = vpop.f32.mrf.mxu0
        %2532 = vmatprep.mubr.bf16.mxu0 %v1760
        %2533 = vmatmul.mubr.bf16.gmra.mxu0 %v1712
        %v2534 = vpop.f32.mrf.mxu0
        %v2535 = vadd.f32 %v2438, %v2534
        %v2536 = vpop.f32.mrf.mxu0
        %v2537 = vpop.f32.mrf.mxu0
        %v2538 = vadd.f32 %v2441, %v2537
        %v2539 = vpop.f32.mrf.mxu0
        %2540 = vmatprep.mubr.bf16.mxu0 %v1761
        %2541 = vmatmul.mubr.bf16.gmra.mxu0 %v1713
        %v2542 = vpop.f32.mrf.mxu0
        %v2543 = vadd.f32 %v2446, %v2542
        %v2544 = vpop.f32.mrf.mxu0
        %v2545 = vpop.f32.mrf.mxu0
        %v2546 = vadd.f32 %v2449, %v2545
        %v2547 = vpop.f32.mrf.mxu0
        %2548 = vmatprep.mubr.bf16.mxu0 %v1762
        %2549 = vmatmul.mubr.bf16.gmra.mxu0 %v1714
        %v2550 = vpop.f32.mrf.mxu0
        %v2551 = vadd.f32 %v2454, %v2550
        %v2552 = vpop.f32.mrf.mxu0
        %v2553 = vpop.f32.mrf.mxu0
        %v2554 = vadd.f32 %v2457, %v2553
        %v2555 = vpop.f32.mrf.mxu0
        %2556 = vdwg.mxu0
        %2557 = vmatprep.subr.bf16.mxu0 0
        %2558 = vmatpush1.bf16.msra.mxu0 %v2290
        %2559 = vmatprep.subr.bf16.mxu0 0
        %2560 = vmatpush1.bf16.msra.mxu0 %v2289
        %2561 = vmatprep.subr.bf16.mxu0 0
        %2562 = vmatpush1.bf16.msra.mxu0 %v2288
        %2563 = vmatprep.subr.bf16.mxu0 0
        %2564 = vmatpush1.bf16.msra.mxu0 %v2287
        %2565 = vmatprep.subr.bf16.mxu0 0
        %2566 = vmatpush1.bf16.msra.mxu0 %v2286
        %2567 = vmatprep.subr.bf16.mxu0 0
        %2568 = vmatpush1.bf16.msra.mxu0 %v2285
        %2569 = vmatprep.subr.bf16.mxu0 0
        %2570 = vmatpush1.bf16.msra.mxu0 %v2284
        %2571 = vmatprep.subr.bf16.mxu0 0
        %2572 = vmatpush1.bf16.msra.mxu0 %v2283
        %2573 = vmatprep.subr.bf16.mxu0 0
        %2574 = vmatpush2.bf16.msra.mxu0 %v2298
        %2575 = vmatprep.subr.bf16.mxu0 0
        %2576 = vmatpush2.bf16.msra.mxu0 %v2297
        %2577 = vmatprep.subr.bf16.mxu0 0
        %2578 = vmatpush2.bf16.msra.mxu0 %v2296
        %2579 = vmatprep.subr.bf16.mxu0 0
        %2580 = vmatpush2.bf16.msra.mxu0 %v2295
        %2581 = vmatprep.subr.bf16.mxu0 0
        %2582 = vmatpush2.bf16.msra.mxu0 %v2294
        %2583 = vmatprep.subr.bf16.mxu0 0
        %2584 = vmatpush2.bf16.msra.mxu0 %v2293
        %2585 = vmatprep.subr.bf16.mxu0 0
        %2586 = vmatpush2.bf16.msra.mxu0 %v2292
        %2587 = vmatprep.subr.bf16.mxu0 0
        %2588 = vmatpush2.bf16.msra.mxu0 %v2291
        %2589 = vmatprep.mubr.bf16.mxu0 %v1851
        %2590 = vmatmul.mubr.bf16.gmra.mxu0 %v1803
        %v2591 = vpop.f32.mrf.mxu0
        %v2592 = vadd.f32 %v2495, %v2591
        %v2593 = vpop.f32.mrf.mxu0
        %v2594 = vpop.f32.mrf.mxu0
        %v2595 = vadd.f32 %v2498, %v2594
        %v2596 = vpop.f32.mrf.mxu0
        %2597 = vmatprep.mubr.bf16.mxu0 %v1852
        %2598 = vmatmul.mubr.bf16.gmra.mxu0 %v1804
        %v2599 = vpop.f32.mrf.mxu0
        %v2600 = vadd.f32 %v2503, %v2599
        %v2601 = vpop.f32.mrf.mxu0
        %v2602 = vpop.f32.mrf.mxu0
        %v2603 = vadd.f32 %v2506, %v2602
        %v2604 = vpop.f32.mrf.mxu0
        %2605 = vmatprep.mubr.bf16.mxu0 %v1853
        %2606 = vmatmul.mubr.bf16.gmra.mxu0 %v1805
        %v2607 = vpop.f32.mrf.mxu0
        %v2608 = vadd.f32 %v2511, %v2607
        %v2609 = vpop.f32.mrf.mxu0
        %v2610 = vpop.f32.mrf.mxu0
        %v2611 = vadd.f32 %v2514, %v2610
        %v2612 = vpop.f32.mrf.mxu0
        %2613 = vmatprep.mubr.bf16.mxu0 %v1854
        %2614 = vmatmul.mubr.bf16.gmra.mxu0 %v1806
        %v2615 = vpop.f32.mrf.mxu0
        %v2616 = vadd.f32 %v2519, %v2615
        %v2617 = vpop.f32.mrf.mxu0
        %v2618 = vpop.f32.mrf.mxu0
        %v2619 = vadd.f32 %v2522, %v2618
        %v2620 = vpop.f32.mrf.mxu0
        %2621 = vmatprep.mubr.bf16.mxu0 %v1855
        %2622 = vmatmul.mubr.bf16.gmra.mxu0 %v1807
        %v2623 = vpop.f32.mrf.mxu0
        %v2624 = vadd.f32 %v2527, %v2623
        %v2625 = vpop.f32.mrf.mxu0
        %v2626 = vpop.f32.mrf.mxu0
        %v2627 = vadd.f32 %v2530, %v2626
        %v2628 = vpop.f32.mrf.mxu0
        %2629 = vmatprep.mubr.bf16.mxu0 %v1856
        %2630 = vmatmul.mubr.bf16.gmra.mxu0 %v1808
        %v2631 = vpop.f32.mrf.mxu0
        %v2632 = vadd.f32 %v2535, %v2631
        %v2633 = vpop.f32.mrf.mxu0
        %v2634 = vpop.f32.mrf.mxu0
        %v2635 = vadd.f32 %v2538, %v2634
        %v2636 = vpop.f32.mrf.mxu0
        %2637 = vmatprep.mubr.bf16.mxu0 %v1857
        %2638 = vmatmul.mubr.bf16.gmra.mxu0 %v1809
        %v2639 = vpop.f32.mrf.mxu0
        %v2640 = vadd.f32 %v2543, %v2639
        %v2641 = vpop.f32.mrf.mxu0
        %v2642 = vpop.f32.mrf.mxu0
        %v2643 = vadd.f32 %v2546, %v2642
        %v2644 = vpop.f32.mrf.mxu0
        %2645 = vmatprep.mubr.bf16.mxu0 %v1858
        %2646 = vmatmul.mubr.bf16.gmra.mxu0 %v1810
        %v2647 = vpop.f32.mrf.mxu0
        %v2648 = vadd.f32 %v2551, %v2647
        %v2649 = vpop.f32.mrf.mxu0
        %v2650 = vpop.f32.mrf.mxu0
        %v2651 = vadd.f32 %v2554, %v2650
        %v2652 = vpop.f32.mrf.mxu0
        %2653 = vdwg.mxu0
        %2654 = vmatprep.subr.bf16.mxu0 0
        %2655 = vmatpush1.bf16.msra.mxu0 %v2306
        %2656 = vmatprep.subr.bf16.mxu0 0
        %2657 = vmatpush1.bf16.msra.mxu0 %v2305
        %2658 = vmatprep.subr.bf16.mxu0 0
        %2659 = vmatpush1.bf16.msra.mxu0 %v2304
        %2660 = vmatprep.subr.bf16.mxu0 0
        %2661 = vmatpush1.bf16.msra.mxu0 %v2303
        %2662 = vmatprep.subr.bf16.mxu0 0
        %2663 = vmatpush1.bf16.msra.mxu0 %v2302
        %2664 = vmatprep.subr.bf16.mxu0 0
        %2665 = vmatpush1.bf16.msra.mxu0 %v2301
        %2666 = vmatprep.subr.bf16.mxu0 0
        %2667 = vmatpush1.bf16.msra.mxu0 %v2300
        %2668 = vmatprep.subr.bf16.mxu0 0
        %2669 = vmatpush1.bf16.msra.mxu0 %v2299
        %2670 = vmatprep.subr.bf16.mxu0 0
        %2671 = vmatpush2.bf16.msra.mxu0 0
        %2672 = vmatprep.subr.bf16.mxu0 0
        %2673 = vmatpush2.bf16.msra.mxu0 0
        %2674 = vmatprep.subr.bf16.mxu0 0
        %2675 = vmatpush2.bf16.msra.mxu0 0
        %2676 = vmatprep.subr.bf16.mxu0 0
        %2677 = vmatpush2.bf16.msra.mxu0 0
        %2678 = vmatprep.subr.bf16.mxu0 0
        %2679 = vmatpush2.bf16.msra.mxu0 0
        %2680 = vmatprep.subr.bf16.mxu0 0
        %2681 = vmatpush2.bf16.msra.mxu0 0
        %2682 = vmatprep.subr.bf16.mxu0 0
        %2683 = vmatpush2.bf16.msra.mxu0 0
        %2684 = vmatprep.subr.bf16.mxu0 0
        %2685 = vmatpush2.bf16.msra.mxu0 0
        %2686 = vmatprep.mubr.bf16.mxu0 0
        %2687 = vmatmul.mubr.bf16.gmra.mxu0 %v1899
        %v2688 = vpop.f32.mrf.mxu0
        %v2689 = vadd.f32 %v2592, %v2688
        %v2690 = vpop.f32.mrf.mxu0
        %v2691 = vpop.f32.mrf.mxu0
        %v2692 = vadd.f32 %v2595, %v2691
        %v2693 = vpop.f32.mrf.mxu0
        %2694 = vmatprep.mubr.bf16.mxu0 0
        %2695 = vmatmul.mubr.bf16.gmra.mxu0 %v1900
        %v2696 = vpop.f32.mrf.mxu0
        %v2697 = vadd.f32 %v2600, %v2696
        %v2698 = vpop.f32.mrf.mxu0
        %v2699 = vpop.f32.mrf.mxu0
        %v2700 = vadd.f32 %v2603, %v2699
        %v2701 = vpop.f32.mrf.mxu0
        %2702 = vmatprep.mubr.bf16.mxu0 0
        %2703 = vmatmul.mubr.bf16.gmra.mxu0 %v1901
        %v2704 = vpop.f32.mrf.mxu0
        %v2705 = vadd.f32 %v2608, %v2704
        %v2706 = vpop.f32.mrf.mxu0
        %v2707 = vpop.f32.mrf.mxu0
        %v2708 = vadd.f32 %v2611, %v2707
        %v2709 = vpop.f32.mrf.mxu0
        %2710 = vmatprep.mubr.bf16.mxu0 0
        %2711 = vmatmul.mubr.bf16.gmra.mxu0 %v1902
        %v2712 = vpop.f32.mrf.mxu0
        %v2713 = vadd.f32 %v2616, %v2712
        %v2714 = vpop.f32.mrf.mxu0
        %v2715 = vpop.f32.mrf.mxu0
        %v2716 = vadd.f32 %v2619, %v2715
        %v2717 = vpop.f32.mrf.mxu0
        %2718 = vmatprep.mubr.bf16.mxu0 0
        %2719 = vmatmul.mubr.bf16.gmra.mxu0 %v1903
        %v2720 = vpop.f32.mrf.mxu0
        %v2721 = vadd.f32 %v2624, %v2720
        %v2722 = vpop.f32.mrf.mxu0
        %v2723 = vpop.f32.mrf.mxu0
        %v2724 = vadd.f32 %v2627, %v2723
        %v2725 = vpop.f32.mrf.mxu0
        %2726 = vmatprep.mubr.bf16.mxu0 0
        %2727 = vmatmul.mubr.bf16.gmra.mxu0 %v1904
        %v2728 = vpop.f32.mrf.mxu0
        %v2729 = vadd.f32 %v2632, %v2728
        %v2730 = vpop.f32.mrf.mxu0
        %v2731 = vpop.f32.mrf.mxu0
        %v2732 = vadd.f32 %v2635, %v2731
        %v2733 = vpop.f32.mrf.mxu0
        %2734 = vmatprep.mubr.bf16.mxu0 0
        %2735 = vmatmul.mubr.bf16.gmra.mxu0 %v1905
        %v2736 = vpop.f32.mrf.mxu0
        %v2737 = vadd.f32 %v2640, %v2736
        %v2738 = vpop.f32.mrf.mxu0
        %v2739 = vpop.f32.mrf.mxu0
        %v2740 = vadd.f32 %v2643, %v2739
        %v2741 = vpop.f32.mrf.mxu0
        %2742 = vmatprep.mubr.bf16.mxu0 0
        %2743 = vmatmul.mubr.bf16.gmra.mxu0 %v1906
        %v2744 = vpop.f32.mrf.mxu0
        %v2745 = vadd.f32 %v2648, %v2744
        %v2746 = vpop.f32.mrf.mxu0
        %v2747 = vpop.f32.mrf.mxu0
        %v2748 = vadd.f32 %v2651, %v2747
        %v2749 = vpop.f32.mrf.mxu0
        %2750 = vdwg.mxu0
        %vm2751 = vcmp.ne.f32.partialorder %v395, 0.0
        %vm2752 = vcmp.ne.f32.partialorder %v396, 0.0
        %vm2753 = vcmp.ne.f32.partialorder %v397, 0.0
        %vm2754 = vcmp.ne.f32.partialorder %v398, 0.0
        %vm2755 = vcmp.ne.f32.partialorder %v399, 0.0
        %vm2756 = vcmp.ne.f32.partialorder %v400, 0.0
        %vm2757 = vcmp.ne.f32.partialorder %v401, 0.0
        %vm2758 = vcmp.ne.f32.partialorder %v402, 0.0
        %vm2759 = vcmp.ne.f32.partialorder %v403, 0.0
        %vm2760 = vcmp.ne.f32.partialorder %v404, 0.0
        %vm2761 = vcmp.ne.f32.partialorder %v405, 0.0
        %vm2762 = vcmp.ne.f32.partialorder %v406, 0.0
        %vm2763 = vcmp.ne.f32.partialorder %v407, 0.0
        %vm2764 = vcmp.ne.f32.partialorder %v408, 0.0
        %vm2765 = vcmp.ne.f32.partialorder %v409, 0.0
        %vm2766 = vcmp.ne.f32.partialorder %v410, 0.0
        %v2767 = vsel %vm2751, %v395, -1e+30
        %v2768 = vsel %vm2752, %v396, -1e+30
        %v2769 = vsel %vm2753, %v397, -1e+30
        %v2770 = vsel %vm2754, %v398, -1e+30
        %v2771 = vsel %vm2755, %v399, -1e+30
        %v2772 = vsel %vm2756, %v400, -1e+30
        %v2773 = vsel %vm2757, %v401, -1e+30
        %v2774 = vsel %vm2758, %v402, -1e+30
        %v2775 = vsel %vm2759, %v403, -1e+30
        %v2776 = vsel %vm2760, %v404, -1e+30
        %v2777 = vsel %vm2761, %v405, -1e+30
        %v2778 = vsel %vm2762, %v406, -1e+30
        %v2779 = vsel %vm2763, %v407, -1e+30
        %v2780 = vsel %vm2764, %v408, -1e+30
        %v2781 = vsel %vm2765, %v409, -1e+30
        %v2782 = vsel %vm2766, %v410, -1e+30
        %2783 = vmax.xlane.f32.xlu0 %v2767
        %v2784 = vpop.xlane.xlu0 %2783
        %2785 = vmax.xlane.f32.xlu0 %v2768
        %v2786 = vpop.xlane.xlu0 %2785
        %2787 = vmax.xlane.f32.xlu0 %v2769
        %v2788 = vpop.xlane.xlu0 %2787
        %2789 = vmax.xlane.f32.xlu0 %v2770
        %v2790 = vpop.xlane.xlu0 %2789
        %2791 = vmax.xlane.f32.xlu0 %v2771
        %v2792 = vpop.xlane.xlu0 %2791
        %2793 = vmax.xlane.f32.xlu0 %v2772
        %v2794 = vpop.xlane.xlu0 %2793
        %2795 = vmax.xlane.f32.xlu0 %v2773
        %v2796 = vpop.xlane.xlu0 %2795
        %2797 = vmax.xlane.f32.xlu0 %v2774
        %v2798 = vpop.xlane.xlu0 %2797
        %2799 = vmax.xlane.f32.xlu0 %v2775
        %v2800 = vpop.xlane.xlu0 %2799
        %2801 = vmax.xlane.f32.xlu0 %v2776
        %v2802 = vpop.xlane.xlu0 %2801
        %2803 = vmax.xlane.f32.xlu0 %v2777
        %v2804 = vpop.xlane.xlu0 %2803
        %2805 = vmax.xlane.f32.xlu0 %v2778
        %v2806 = vpop.xlane.xlu0 %2805
        %2807 = vmax.xlane.f32.xlu0 %v2779
        %v2808 = vpop.xlane.xlu0 %2807
        %2809 = vmax.xlane.f32.xlu0 %v2780
        %v2810 = vpop.xlane.xlu0 %2809
        %2811 = vmax.xlane.f32.xlu0 %v2781
        %v2812 = vpop.xlane.xlu0 %2811
        %2813 = vmax.xlane.f32.xlu0 %v2782
        %v2814 = vpop.xlane.xlu0 %2813
        %v2815 = vsub.f32 %v2767, %v2784
        %v2816 = vsub.f32 %v2768, %v2786
        %v2817 = vsub.f32 %v2769, %v2788
        %v2818 = vsub.f32 %v2770, %v2790
        %v2819 = vsub.f32 %v2771, %v2792
        %v2820 = vsub.f32 %v2772, %v2794
        %v2821 = vsub.f32 %v2773, %v2796
        %v2822 = vsub.f32 %v2774, %v2798
        %v2823 = vsub.f32 %v2775, %v2800
        %v2824 = vsub.f32 %v2776, %v2802
        %v2825 = vsub.f32 %v2777, %v2804
        %v2826 = vsub.f32 %v2778, %v2806
        %v2827 = vsub.f32 %v2779, %v2808
        %v2828 = vsub.f32 %v2780, %v2810
        %v2829 = vsub.f32 %v2781, %v2812
        %v2830 = vsub.f32 %v2782, %v2814
        %v2831 = vmul.f32 %v2815, 1.442695
        %v2832 = vpow.pop %v2831
        %v2833 = vmul.f32 %v2816, 1.442695
        %v2834 = vpow.pop %v2833
        %v2835 = vmul.f32 %v2817, 1.442695
        %v2836 = vpow.pop %v2835
        %v2837 = vmul.f32 %v2818, 1.442695
        %v2838 = vpow.pop %v2837
        %v2839 = vmul.f32 %v2819, 1.442695
        %v2840 = vpow.pop %v2839
        %v2841 = vmul.f32 %v2820, 1.442695
        %v2842 = vpow.pop %v2841
        %v2843 = vmul.f32 %v2821, 1.442695
        %v2844 = vpow.pop %v2843
        %v2845 = vmul.f32 %v2822, 1.442695
        %v2846 = vpow.pop %v2845
        %v2847 = vmul.f32 %v2823, 1.442695
        %v2848 = vpow.pop %v2847
        %v2849 = vmul.f32 %v2824, 1.442695
        %v2850 = vpow.pop %v2849
        %v2851 = vmul.f32 %v2825, 1.442695
        %v2852 = vpow.pop %v2851
        %v2853 = vmul.f32 %v2826, 1.442695
        %v2854 = vpow.pop %v2853
        %v2855 = vmul.f32 %v2827, 1.442695
        %v2856 = vpow.pop %v2855
        %v2857 = vmul.f32 %v2828, 1.442695
        %v2858 = vpow.pop %v2857
        %v2859 = vmul.f32 %v2829, 1.442695
        %v2860 = vpow.pop %v2859
        %v2861 = vmul.f32 %v2830, 1.442695
        %v2862 = vpow.pop %v2861
        %v2863 = vsel %vm2751, %v2832, 0.0
        %v2864 = vsel %vm2752, %v2834, 0.0
        %v2865 = vsel %vm2753, %v2836, 0.0
        %v2866 = vsel %vm2754, %v2838, 0.0
        %v2867 = vsel %vm2755, %v2840, 0.0
        %v2868 = vsel %vm2756, %v2842, 0.0
        %v2869 = vsel %vm2757, %v2844, 0.0
        %v2870 = vsel %vm2758, %v2846, 0.0
        %v2871 = vsel %vm2759, %v2848, 0.0
        %v2872 = vsel %vm2760, %v2850, 0.0
        %v2873 = vsel %vm2761, %v2852, 0.0
        %v2874 = vsel %vm2762, %v2854, 0.0
        %v2875 = vsel %vm2763, %v2856, 0.0
        %v2876 = vsel %vm2764, %v2858, 0.0
        %v2877 = vsel %vm2765, %v2860, 0.0
        %v2878 = vsel %vm2766, %v2862, 0.0
        %2879 = vadd.xlane.f32.xlu0 %v2863
        %v2880 = vpop.xlane.xlu0 %2879
        %2881 = vadd.xlane.f32.xlu0 %v2864
        %v2882 = vpop.xlane.xlu0 %2881
        %2883 = vadd.xlane.f32.xlu0 %v2865
        %v2884 = vpop.xlane.xlu0 %2883
        %2885 = vadd.xlane.f32.xlu0 %v2866
        %v2886 = vpop.xlane.xlu0 %2885
        %2887 = vadd.xlane.f32.xlu0 %v2867
        %v2888 = vpop.xlane.xlu0 %2887
        %2889 = vadd.xlane.f32.xlu0 %v2868
        %v2890 = vpop.xlane.xlu0 %2889
        %2891 = vadd.xlane.f32.xlu0 %v2869
        %v2892 = vpop.xlane.xlu0 %2891
        %2893 = vadd.xlane.f32.xlu0 %v2870
        %v2894 = vpop.xlane.xlu0 %2893
        %2895 = vadd.xlane.f32.xlu0 %v2871
        %v2896 = vpop.xlane.xlu0 %2895
        %2897 = vadd.xlane.f32.xlu0 %v2872
        %v2898 = vpop.xlane.xlu0 %2897
        %2899 = vadd.xlane.f32.xlu0 %v2873
        %v2900 = vpop.xlane.xlu0 %2899
        %2901 = vadd.xlane.f32.xlu0 %v2874
        %v2902 = vpop.xlane.xlu0 %2901
        %2903 = vadd.xlane.f32.xlu0 %v2875
        %v2904 = vpop.xlane.xlu0 %2903
        %2905 = vadd.xlane.f32.xlu0 %v2876
        %v2906 = vpop.xlane.xlu0 %2905
        %2907 = vadd.xlane.f32.xlu0 %v2877
        %v2908 = vpop.xlane.xlu0 %2907
        %2909 = vadd.xlane.f32.xlu0 %v2878
        %v2910 = vpop.xlane.xlu0 %2909
        %v2911 = vmax.f32 %v2880, 1e-12
        %v2912 = vmax.f32 %v2882, 1e-12
        %v2913 = vmax.f32 %v2884, 1e-12
        %v2914 = vmax.f32 %v2886, 1e-12
        %v2915 = vmax.f32 %v2888, 1e-12
        %v2916 = vmax.f32 %v2890, 1e-12
        %v2917 = vmax.f32 %v2892, 1e-12
        %v2918 = vmax.f32 %v2894, 1e-12
        %v2919 = vmax.f32 %v2896, 1e-12
        %v2920 = vmax.f32 %v2898, 1e-12
        %v2921 = vmax.f32 %v2900, 1e-12
        %v2922 = vmax.f32 %v2902, 1e-12
        %v2923 = vmax.f32 %v2904, 1e-12
        %v2924 = vmax.f32 %v2906, 1e-12
        %v2925 = vmax.f32 %v2908, 1e-12
        %v2926 = vmax.f32 %v2910, 1e-12
        %v2927 = vrcp.pop %v2911
        %v2928 = vmul.f32 %v2863, %v2927
        %v2929 = vrcp.pop %v2912
        %v2930 = vmul.f32 %v2864, %v2929
        %v2931 = vrcp.pop %v2913
        %v2932 = vmul.f32 %v2865, %v2931
        %v2933 = vrcp.pop %v2914
        %v2934 = vmul.f32 %v2866, %v2933
        %v2935 = vrcp.pop %v2915
        %v2936 = vmul.f32 %v2867, %v2935
        %v2937 = vrcp.pop %v2916
        %v2938 = vmul.f32 %v2868, %v2937
        %v2939 = vrcp.pop %v2917
        %v2940 = vmul.f32 %v2869, %v2939
        %v2941 = vrcp.pop %v2918
        %v2942 = vmul.f32 %v2870, %v2941
        %v2943 = vrcp.pop %v2919
        %v2944 = vmul.f32 %v2871, %v2943
        %v2945 = vrcp.pop %v2920
        %v2946 = vmul.f32 %v2872, %v2945
        %v2947 = vrcp.pop %v2921
        %v2948 = vmul.f32 %v2873, %v2947
        %v2949 = vrcp.pop %v2922
        %v2950 = vmul.f32 %v2874, %v2949
        %v2951 = vrcp.pop %v2923
        %v2952 = vmul.f32 %v2875, %v2951
        %v2953 = vrcp.pop %v2924
        %v2954 = vmul.f32 %v2876, %v2953
        %v2955 = vrcp.pop %v2925
        %v2956 = vmul.f32 %v2877, %v2955
        %v2957 = vrcp.pop %v2926
        %v2958 = vmul.f32 %v2878, %v2957
        %v2959 = vpack.c.bf16 %v2930, %v2928
        %v2960 = vpack.c.bf16 %v2934, %v2932
        %v2961 = vpack.c.bf16 %v2938, %v2936
        %v2962 = vpack.c.bf16 %v2942, %v2940
        %v2963 = vpack.c.bf16 %v2946, %v2944
        %v2964 = vpack.c.bf16 %v2950, %v2948
        %v2965 = vpack.c.bf16 %v2954, %v2952
        %v2966 = vpack.c.bf16 %v2958, %v2956
        %v2967 = vpack.c.bf16 %v2692, %v2689
        %v2968 = vpack.c.bf16 %v2700, %v2697
        %v2969 = vpack.c.bf16 %v2708, %v2705
        %v2970 = vpack.c.bf16 %v2716, %v2713
        %v2971 = vpack.c.bf16 %v2724, %v2721
        %v2972 = vpack.c.bf16 %v2732, %v2729
        %v2973 = vpack.c.bf16 %v2740, %v2737
        %v2974 = vpack.c.bf16 %v2748, %v2745
        %v2975 = vld [vmem:[%s4] sm:$0x1]
        %v2977 = vlaneseq
        %v2978 = vshrl.u32 %v2977, 7
        %v2979 = vsub.s32 0, %v2978
        %v2980 = vrot.slane %v2975, %v2979
        %2982 = vmatprep.subr.bf16.mxu0 0
        %2983 = vmatpush1.bf16.msra.mxu0 %v2974
        %2984 = vmatprep.subr.bf16.mxu0 0
        %2985 = vmatpush1.bf16.msra.mxu0 %v2973
        %2986 = vmatprep.subr.bf16.mxu0 0
        %2987 = vmatpush1.bf16.msra.mxu0 %v2972
        %2988 = vmatprep.subr.bf16.mxu0 0
        %2989 = vmatpush1.bf16.msra.mxu0 %v2971
        %2990 = vmatprep.subr.bf16.mxu0 0
        %2991 = vmatpush1.bf16.msra.mxu0 %v2970
        %2992 = vmatprep.subr.bf16.mxu0 0
        %2993 = vmatpush1.bf16.msra.mxu0 %v2969
        %2994 = vmatprep.subr.bf16.mxu0 0
        %2995 = vmatpush1.bf16.msra.mxu0 %v2968
        %2996 = vmatprep.subr.bf16.mxu0 0
        %2997 = vmatpush1.bf16.msra.mxu0 %v2967
        %2998 = vmatprep.subr.bf16.mxu0 0
        %2999 = vmatpush2.bf16.msra.mxu0 0
        %3000 = vmatprep.subr.bf16.mxu0 0
        %3001 = vmatpush2.bf16.msra.mxu0 0
        %3002 = vmatprep.subr.bf16.mxu0 0
        %3003 = vmatpush2.bf16.msra.mxu0 0
        %3004 = vmatprep.subr.bf16.mxu0 0
        %3005 = vmatpush2.bf16.msra.mxu0 0
        %3006 = vmatprep.subr.bf16.mxu0 0
        %3007 = vmatpush2.bf16.msra.mxu0 0
        %3008 = vmatprep.subr.bf16.mxu0 0
        %3009 = vmatpush2.bf16.msra.mxu0 0
        %3010 = vmatprep.subr.bf16.mxu0 0
        %3011 = vmatpush2.bf16.msra.mxu0 0
        %3012 = vmatprep.subr.bf16.mxu0 0
        %3013 = vmatpush2.bf16.msra.mxu0 0
        %3014 = vmatprep.mubr.bf16.mxu0 0
        %3015 = vmatmul.mubr.bf16.gmra.mxu0 %v2959
        %v3016 = vpop.f32.mrf.mxu0
        %v3017 = vadd.f32 %v2980, %v3016
        %v3018 = vpop.f32.mrf.mxu0
        %v3019 = vpop.f32.mrf.mxu0
        %v3020 = vadd.f32 %v2980, %v3019
        %v3021 = vpop.f32.mrf.mxu0
        %3022 = vmatprep.mubr.bf16.mxu0 0
        %3023 = vmatmul.mubr.bf16.gmra.mxu0 %v2960
        %v3024 = vpop.f32.mrf.mxu0
        %v3025 = vadd.f32 %v2980, %v3024
        %v3026 = vpop.f32.mrf.mxu0
        %v3027 = vpop.f32.mrf.mxu0
        %v3028 = vadd.f32 %v2980, %v3027
        %v3029 = vpop.f32.mrf.mxu0
        %3030 = vmatprep.mubr.bf16.mxu0 0
        %3031 = vmatmul.mubr.bf16.gmra.mxu0 %v2961
        %v3032 = vpop.f32.mrf.mxu0
        %v3033 = vadd.f32 %v2980, %v3032
        %v3034 = vpop.f32.mrf.mxu0
        %v3035 = vpop.f32.mrf.mxu0
        %v3036 = vadd.f32 %v2980, %v3035
        %v3037 = vpop.f32.mrf.mxu0
        %3038 = vmatprep.mubr.bf16.mxu0 0
        %3039 = vmatmul.mubr.bf16.gmra.mxu0 %v2962
        %v3040 = vpop.f32.mrf.mxu0
        %v3041 = vadd.f32 %v2980, %v3040
        %v3042 = vpop.f32.mrf.mxu0
        %v3043 = vpop.f32.mrf.mxu0
        %v3044 = vadd.f32 %v2980, %v3043
        %v3045 = vpop.f32.mrf.mxu0
        %3046 = vmatprep.mubr.bf16.mxu0 0
        %3047 = vmatmul.mubr.bf16.gmra.mxu0 %v2963
        %v3048 = vpop.f32.mrf.mxu0
        %v3049 = vadd.f32 %v2980, %v3048
        %v3050 = vpop.f32.mrf.mxu0
        %v3051 = vpop.f32.mrf.mxu0
        %v3052 = vadd.f32 %v2980, %v3051
        %v3053 = vpop.f32.mrf.mxu0
        %3054 = vmatprep.mubr.bf16.mxu0 0
        %3055 = vmatmul.mubr.bf16.gmra.mxu0 %v2964
        %v3056 = vpop.f32.mrf.mxu0
        %v3057 = vadd.f32 %v2980, %v3056
        %v3058 = vpop.f32.mrf.mxu0
        %v3059 = vpop.f32.mrf.mxu0
        %v3060 = vadd.f32 %v2980, %v3059
        %v3061 = vpop.f32.mrf.mxu0
        %3062 = vmatprep.mubr.bf16.mxu0 0
        %3063 = vmatmul.mubr.bf16.gmra.mxu0 %v2965
        %v3064 = vpop.f32.mrf.mxu0
        %v3065 = vadd.f32 %v2980, %v3064
        %v3066 = vpop.f32.mrf.mxu0
        %v3067 = vpop.f32.mrf.mxu0
        %v3068 = vadd.f32 %v2980, %v3067
        %v3069 = vpop.f32.mrf.mxu0
        %3070 = vmatprep.mubr.bf16.mxu0 0
        %3071 = vmatmul.mubr.bf16.gmra.mxu0 %v2966
        %v3072 = vpop.f32.mrf.mxu0
        %v3073 = vadd.f32 %v2980, %v3072
        %v3074 = vpop.f32.mrf.mxu0
        %v3075 = vpop.f32.mrf.mxu0
        %v3076 = vadd.f32 %v2980, %v3075
        %v3077 = vpop.f32.mrf.mxu0
        %3078 = vdwg.mxu0
        %v3079 = vpack.c.bf16 %v3020, %v3017
        %v3080 = vpack.c.bf16 %v3028, %v3025
        %v3081 = vpack.c.bf16 %v3036, %v3033
        %v3082 = vpack.c.bf16 %v3044, %v3041
        %v3083 = vpack.c.bf16 %v3052, %v3049
        %v3084 = vpack.c.bf16 %v3060, %v3057
        %v3085 = vpack.c.bf16 %v3068, %v3065
        %v3086 = vpack.c.bf16 %v3076, %v3073
        %v3095 = vunpack.c.l.b16 %v3079
        %v3096 = vunpack.c.h.b16 %v3079
        %v3097 = vunpack.c.l.b16 %v3080
        %v3098 = vunpack.c.h.b16 %v3080
        %v3099 = vunpack.c.l.b16 %v3081
        %v3100 = vunpack.c.h.b16 %v3081
        %v3101 = vunpack.c.l.b16 %v3082
        %v3102 = vunpack.c.h.b16 %v3082
        %v3103 = vunpack.c.l.b16 %v3083
        %v3104 = vunpack.c.h.b16 %v3083
        %v3105 = vunpack.c.l.b16 %v3084
        %v3106 = vunpack.c.h.b16 %v3084
        %v3107 = vunpack.c.l.b16 %v3085
        %v3108 = vunpack.c.h.b16 %v3085
        %v3109 = vunpack.c.l.b16 %v3086
        %v3110 = vunpack.c.h.b16 %v3086
        %v3111 = vpack.c.b16 %v3095, %v3095
        %v3112 = vpack.c.b16 %v3096, %v3096
        %v3113 = vpack.c.b16 %v3097, %v3097
        %v3114 = vpack.c.b16 %v3098, %v3098
        %v3115 = vpack.c.b16 %v3099, %v3099
        %v3116 = vpack.c.b16 %v3100, %v3100
        %v3117 = vpack.c.b16 %v3101, %v3101
        %v3118 = vpack.c.b16 %v3102, %v3102
        %v3119 = vpack.c.b16 %v3103, %v3103
        %v3120 = vpack.c.b16 %v3104, %v3104
        %v3121 = vpack.c.b16 %v3105, %v3105
        %v3122 = vpack.c.b16 %v3106, %v3106
        %v3123 = vpack.c.b16 %v3107, %v3107
        %v3124 = vpack.c.b16 %v3108, %v3108
        %v3125 = vpack.c.b16 %v3109, %v3109
        %v3126 = vpack.c.b16 %v3110, %v3110
        %3143 = vst [vmem:[%s345] sm:$0xf] %v3111
        %3144 = vst [vmem:[%s345 + $0x4] sm:$0xf] %v3112
        %3145 = vst [vmem:[%s345 + $0x8] sm:$0xf] %v3113
        %3146 = vst [vmem:[%s345 + $0xc] sm:$0xf] %v3114
        %3147 = vst [vmem:[%s345 + $0x10] sm:$0xf] %v3115
        %3148 = vst [vmem:[%s345 + $0x14] sm:$0xf] %v3116
        %3149 = vst [vmem:[%s345 + $0x18] sm:$0xf] %v3117
        %3150 = vst [vmem:[%s345 + $0x1c] sm:$0xf] %v3118
        %3151 = vst [vmem:[%s345 + $0x20] sm:$0xf] %v3119
        %3152 = vst [vmem:[%s345 + $0x24] sm:$0xf] %v3120
        %3153 = vst [vmem:[%s345 + $0x28] sm:$0xf] %v3121
        %3154 = vst [vmem:[%s345 + $0x2c] sm:$0xf] %v3122
        %3155 = vst [vmem:[%s345 + $0x30] sm:$0xf] %v3123
        %3156 = vst [vmem:[%s345 + $0x34] sm:$0xf] %v3124
        %3157 = vst [vmem:[%s345 + $0x38] sm:$0xf] %v3125
        %3158 = vst [vmem:[%s345 + $0x3c] sm:$0xf] %v3126
        %v3159 = vld [vmem:[%s5] sm:$0x1]
        %v3160 = vmul.f32 %v3159, %v3159
        %vm3161 = vcmask 1040384
        %v3162 = vsel %vm3161, %v3160, 0.0
        %3163 = vadd.xlane.f32.xlu0 %v3162
        %v3164 = vpop.xlane.xlu0 %3163
        %v3165 = vrot.slane %v3164, 4
        %v3166 = vadd.f32 %v3164, %v3165
        %v3167 = vrot.slane %v3166, 2
        %v3168 = vadd.f32 %v3166, %v3167
        %v3169 = vrot.slane %v3168, 1
        %v3170 = vadd.f32 %v3168, %v3169
        %s3171 = vtos %v3170
        %s3172 = smax.f32 %s3171, 1e-12
        %v3173 = vstv %s3172
        %v3174 = vrsqrt.pop %v3173
        %s3175 = vtos %v3174
        %3176 = vmatprep.subr.mxu0 0.0
        %3177 = vmatpush1.xpose.msra.mxu0 %v3076
        %3178 = vmatprep.subr.mxu0 0.0
        %3179 = vmatpush1.xpose.msra.mxu0 %v3073
        %3180 = vmatprep.subr.mxu0 0.0
        %3181 = vmatpush1.xpose.msra.mxu0 %v3068
        %3182 = vmatprep.subr.mxu0 0.0
        %3183 = vmatpush1.xpose.msra.mxu0 %v3065
        %3184 = vmatprep.subr.mxu0 0.0
        %3185 = vmatpush1.xpose.msra.mxu0 %v3060
        %3186 = vmatprep.subr.mxu0 0.0
        %3187 = vmatpush1.xpose.msra.mxu0 %v3057
        %3188 = vmatprep.subr.mxu0 0.0
        %3189 = vmatpush1.xpose.msra.mxu0 %v3052
        %3190 = vmatprep.subr.mxu0 0.0
        %3191 = vmatpush1.xpose.msra.mxu0 %v3049
        %3192 = vmatprep.subr.mxu0 0.0
        %3193 = vmatpush1.xpose.msra.mxu0 %v3044
        %3194 = vmatprep.subr.mxu0 0.0
        %3195 = vmatpush1.xpose.msra.mxu0 %v3041
        %3196 = vmatprep.subr.mxu0 0.0
        %3197 = vmatpush1.xpose.msra.mxu0 %v3036
        %3198 = vmatprep.subr.mxu0 0.0
        %3199 = vmatpush1.xpose.msra.mxu0 %v3033
        %3200 = vmatprep.subr.mxu0 0.0
        %3201 = vmatpush1.xpose.msra.mxu0 %v3028
        %3202 = vmatprep.subr.mxu0 0.0
        %3203 = vmatpush1.xpose.msra.mxu0 %v3025
        %3204 = vmatprep.subr.mxu0 0.0
        %3205 = vmatpush1.xpose.msra.mxu0 %v3020
        %3206 = vmatprep.subr.mxu0 0.0
        %3207 = vmatpush1.xpose.msra.mxu0 %v3017
        %3208 = vmatprep.subr.mxu0 0.0
        %3209 = vmatpush2.xpose.msra.mxu0 0.0
        %3210 = vmatprep.subr.mxu0 0.0
        %3211 = vmatpush2.xpose.msra.mxu0 0.0
        %3212 = vmatprep.subr.mxu0 0.0
        %3213 = vmatpush2.xpose.msra.mxu0 0.0
        %3214 = vmatprep.subr.mxu0 0.0
        %3215 = vmatpush2.xpose.msra.mxu0 0.0
        %3216 = vmatprep.subr.mxu0 0.0
        %3217 = vmatpush2.xpose.msra.mxu0 0.0
        %3218 = vmatprep.subr.mxu0 0.0
        %3219 = vmatpush2.xpose.msra.mxu0 0.0
        %3220 = vmatprep.subr.mxu0 0.0
        %3221 = vmatpush2.xpose.msra.mxu0 0.0
        %3222 = vmatprep.subr.mxu0 0.0
        %3223 = vmatpush2.xpose.msra.mxu0 0.0
        %3224 = vmatprep.subr.mxu0 0.0
        %3225 = vmatpush2.xpose.msra.mxu0 0.0
        %3226 = vmatprep.subr.mxu0 0.0
        %3227 = vmatpush2.xpose.msra.mxu0 0.0
        %3228 = vmatprep.subr.mxu0 0.0
        %3229 = vmatpush2.xpose.msra.mxu0 0.0
        %3230 = vmatprep.subr.mxu0 0.0
        %3231 = vmatpush2.xpose.msra.mxu0 0.0
        %3232 = vmatprep.subr.mxu0 0.0
        %3233 = vmatpush2.xpose.msra.mxu0 0.0
        %3234 = vmatprep.subr.mxu0 0.0
        %3235 = vmatpush2.xpose.msra.mxu0 0.0
        %3236 = vmatprep.subr.mxu0 0.0
        %3237 = vmatpush2.xpose.msra.mxu0 0.0
        %3238 = vmatprep.subr.mxu0 0.0
        %3239 = vmatpush2.xpose.msra.mxu0 0.0
        %3240 = vmatprep.mubr.f32.mxu0 0.0
        %3241 = vmatmul.mubr.f32.gmra.mxu0 %v3159
        %v3242 = vpop.f32.mrf.mxu0
        %v3243 = vadd.f32 0.0, %v3242
        %v3244 = vpop.f32.mrf.mxu0
        %3245 = vdwg.mxu0
        %v3246 = vstv %s3175
        %v3247 = vmul.f32 %v3243, %v3246
        %v3248 = vxor.u32 %v3247, 2147483648
        %v3249 = vmul.f32 %v3248, 1.442695
        %v3250 = vpow.pop %v3249
        %v3251 = vadd.f32 %v3250, 1.0
        %v3252 = vrcp.pop %v3251
        %v3253 = vmul.f32 1.0, %v3252
        %3254 = vst [vmem:[%s351] sm:$0x1] %v3253
        %s3255 = sand.u32 %s178, 1
        %s3256 = scalar_lea.sflag [#allocation4], %s3255
        %s3257 = sand.u32 %s178, 1
        %s3258 = smul.addr %s3257, 64
        %s3259 = scalar_lea.vmem [#allocation7], %s3258
        %s3260 = sand.u32 %s204, 1
        %s3261 = scalar_lea.sflag [#allocation9], %s3260
        %s3262 = sand.u32 %s204, 1
        %s3263 = scalar_lea.vmem [#allocation8], %s3262
        // Predicated region
        $region53: #{tpu_custom_call.1} parent=43 // pred_check
          %p3264 = pneg %p188
        $region54: #{tpu_custom_call.1} parent=43 // pred_check_branch
          %3266 = sbr.rel (%p3264) target = $region56
        $region55: #{tpu_custom_call.1} parent=43 // pred_region
          %s3268 = ssub.s32 1024, 1024
          %3269 = vsyncadd %s3256, %s3268
          %s3270 = smul.addr %s29, 16
          %s3271 = smul.addr %s3270, 64
          %s3272 = scalar_lea.hbm %s6, %s3271
          %s3273 = sshll.u32 %s3259, 4
          %s3274 = int_to_ptr.vmem [resolvable:$true] %s3273
          %3279 = dma.vmem_to_hbm [thread:$0]  %s3274, 1024, %s3272, %s3256, 64, 64, 4
        $region56: #{tpu_custom_call.1} parent=43 // pred_fallthru
          _
        // Predicated region
        $region57: #{tpu_custom_call.1} parent=43 // pred_check
          %p3280 = pneg %p214
        $region58: #{tpu_custom_call.1} parent=43 // pred_check_branch
          %3282 = sbr.rel (%p3280) target = $region60
        $region59: #{tpu_custom_call.1} parent=43 // pred_region
          %s3284 = ssub.s32 16, 16
          %3285 = vsyncadd %s3261, %s3284
          %s3286 = smul.addr %s29, 16
          %s3287 = scalar_lea.hbm %s7, %s3286
          %s3289 = sshll.u32 %s3263, 4
          %s3290 = int_to_ptr.vmem [resolvable:$true] %s3289
          %3292 = dma.vmem_to_hbm [thread:$0]  %s3290, 16, %s3287, %s3261
        $region60: #{tpu_custom_call.1} parent=43 // pred_fallthru
          _
      $region44: #{tpu_custom_call.1} parent=5 // pred_fallthru
        _
      %p3293 = scmp.le.s32.totalorder 2, %s24
      // Predicated region
      $region61: #{tpu_custom_call.1} parent=5 // pred_check
        %p3294 = pneg %p3293
      $region62: #{tpu_custom_call.1} parent=5 // pred_check_branch
        %3296 = sbr.rel (%p3294) target = $region64
      $region63: #{tpu_custom_call.1} parent=5 // pred_region
        %s3297 = ssub.s32 %s24, 2
        // Predicated region
        $region65: #{tpu_custom_call.1} parent=63 // pred_check
          %p3298 = pneg %p194
        $region66: #{tpu_custom_call.1} parent=63 // pred_check_branch
          %3300 = sbr.rel (%p3298) target = $region68
        $region67: #{tpu_custom_call.1} parent=63 // pred_region
          %s3301 = sand.u32 %s179, 1
          %s3302 = scalar_lea.sflag [#allocation4], %s3301
          %s3303 = sand.u32 %s179, 1
          %s3304 = smul.addr %s3303, 64
          %s3305 = scalar_lea.vmem [#allocation7], %s3304
          %3306 = dma.done %s3302, 1024
        $region68: #{tpu_custom_call.1} parent=63 // pred_fallthru
          _
        // Predicated region
        $region69: #{tpu_custom_call.1} parent=63 // pred_check
          %p3307 = pneg %p220
        $region70: #{tpu_custom_call.1} parent=63 // pred_check_branch
          %3309 = sbr.rel (%p3307) target = $region72
        $region71: #{tpu_custom_call.1} parent=63 // pred_region
          %s3310 = sand.u32 %s205, 1
          %s3311 = scalar_lea.sflag [#allocation9], %s3310
          %s3312 = sand.u32 %s205, 1
          %s3313 = scalar_lea.vmem [#allocation8], %s3312
          %3314 = dma.done %s3311, 16
        $region72: #{tpu_custom_call.1} parent=63 // pred_fallthru
          _
      $region64: #{tpu_custom_call.1} parent=5 // pred_fallthru
        _
    $region6: #{tpu_custom_call.1} parent=1 // loop_footer
      %s28 = sadd.s32 1, %s24
    $region7: #{tpu_custom_call.1} parent=1 // loop_footer_branch
      %23 = sbr.rel target = $region3
    $region8: #{tpu_custom_call.1} parent=1 // loop_exit
      _
    %3315 = vsyncpa [#allocation3], 1
    %s3316 = scalar_lea.sflag [#allocation3], 1
    %3317 = vsyncpa %s3316, 1
    %3318 = vsyncpa [#allocation6], 1
    %3319 = vsyncpa [#allocation4], 1
    %s3320 = scalar_lea.sflag [#allocation4], 1
    %3321 = vsyncpa %s3320, 1
    %3322 = vsyncpa [#allocation9], 1
    %s3323 = scalar_lea.sflag [#allocation9], 1
    %3324 = vsyncpa %s3323, 1

</llo_original>
